<compile_context>
chip_gen: v7x
topology: tpu7x:2x2x1
jax: 0.10.0
libtpu: 0.0.40
codegen_flags: <defaults>
</compile_context>

<pallas_src>
import itertools
import numpy as np
import jax
import jax.numpy as jnp
from jax import lax
from jax.experimental import pallas as pl
from jax.experimental.pallas import tpu as pltpu

# ---- "gl" globals of the monkey game (chosen deterministically in-script) ----
WASD = ['w', 'a', 's', 'd', ' ']      # 0=w(up) 1=a(left) 2=s(down) 3=d(right) 4=stay
INDEX_BARRIER = 0
INDEX_DANGER = 1
INDEX_BANANA = 2
N_CHANNELS = 4                        # 4th channel unused by forward (never shipped)
RADIUS = 3
VISION = 2 * RADIUS + 1               # 7x7 field of view
MAX_TURN = 2 * RADIUS                 # longest possible monotone path length (6)

# Lane-packed layout: 16 boards per (8,128) tile, 8 lanes (slab) per board.
SLAB = 8                              # lanes per board  (7 real cols + 1 pad)
LP = 16                               # boards per tile
H_PAD = 8                             # sublanes per board (7 real rows + 1 pad)
W_PAD = SLAB * LP                     # 128

# Banana-selection key (board-local coords): dist*2048 + row*256 + col*2 + vbit,
# max real value 13837.  Centre danger/barrier flags ride in a higher field:
# combined = (3 - cf)*2**18 + key, max 802816 < 2**24 -> exact in f32.
BIG_KEY = 16384.0
CF_SCALE = 262144.0                   # 2**18
BIG_COMBINED = 1048576.0              # reject-fill for the lane-segmented min


def _make_kernel(gamma, r_b, r_e, r_d, groups_per_block):
    gamma, r_b, r_e, r_d = float(gamma), float(r_b), float(r_e), float(r_d)
    Q_null = r_e / (1.0 - gamma)
    Q_ave = (r_b + 3.0 * r_e) * (1.0 + gamma + gamma ** 2 + gamma ** 3) / 4.0 \
        + gamma ** 4 * Q_null
    R = float(RADIUS)
    STAY = float(WASD.index(' '))
    W_, A_, S_, D_ = (float(WASD.index(ch)) for ch in 'wasd')
    GB = int(groups_per_block)

    def quality_event(immediate_reward, turn):
        # Q = ir + gamma*Q_ave ; then (turn-1) times: Q = r_e + gamma*Q  (turn traced)
        Q = immediate_reward + gamma * Q_ave
        for i in range(MAX_TURN - 1):
            Q = jnp.where(float(i) < turn - 1.0, r_e + gamma * Q, Q)
        return Q

    def kernel(code_ref, q_ref):
        # ---------- board-independent constants (hoisted; shared by 16*GB boards) ---
        row = lax.broadcasted_iota(jnp.int32, (H_PAD, W_PAD), 0).astype(jnp.float32)
        lane = lax.broadcasted_iota(jnp.int32, (H_PAD, W_PAD), 1).astype(jnp.float32)
        grp = jnp.floor(lane * 0.125)            # board slab id of each lane
        col = lane - 8.0 * grp                   # board-local column (0..7)
        rd = jnp.abs(row - R)                    # row distance to the board centre
        cd = jnp.abs(col - R)                    # col distance to the board centre
        dist = rd + cd
        in_win = (row < float(VISION)) & (col < float(VISION))
        is_centre = (rd == 0.0) & (cd == 0.0)
        seed_v = (cd == 0.0) & (rd == 1.0)
        seed_h = (rd == 0.0) & (cd == 1.0)
        act = col                                # lane offset within a slab == action

        # DP direction gates (data-independent part): a rolled-in neighbour is only
        # accepted if it is strictly closer to the board centre along the rolled axis.
        # Rolling the distance tag together with the values keeps this independent of
        # the roll-direction convention and also rejects anything rolled across a slab
        # or padding seam (the neighbouring slab's boundary column has cd == 4).
        m_v_a = pltpu.roll(rd, shift=1, axis=0) < rd
        m_v_b = pltpu.roll(rd, shift=H_PAD - 1, axis=0) < rd
        m_h_a = pltpu.roll(cd, shift=1, axis=1) < cd
        m_h_b = pltpu.roll(cd, shift=W_PAD - 1, axis=1) < cd

        # Lane-segmented-min masks: a value rolled in by +/-s is accepted only if its
        # source lane belongs to the same 8-lane board slab (convention-free again by
        # rolling the lane tag together with the data).
        seg = []
        for s in (1, 2, 4):
            sa = jnp.floor(pltpu.roll(lane, shift=s, axis=1) * 0.125) == grp
            sb = jnp.floor(pltpu.roll(lane, shift=W_PAD - s, axis=1) * 0.125) == grp
            seg.append((s, sa, sb))

        def process_group(i, carry):
            code = code_ref[i]                            # (8,128) f32, integers 0..31
            hi = jnp.floor(code * 0.125)                  # danger==1 (+1), barrier==1 (+2)
            blocked = (code - 4.0 * jnp.floor(code * 0.25)) != 0.0  # barrier|danger != 0
            has_banana = (code - 8.0 * hi) >= 4.0         # banana != 0
            # Traversable = not blocked and inside the real 7x7 window; the window
            # mask also keeps roll wrap-around out of the DP.
            free = jnp.where((~blocked) & in_win, 1.0, 0.0)

            g_v_a = jnp.where(m_v_a, free, 0.0)
            g_v_b = jnp.where(m_v_b, free, 0.0)
            g_h_a = jnp.where(m_h_a, free, 0.0)
            g_h_b = jnp.where(m_h_b, free, 0.0)

            def relax(reach):
                pred_v = (pltpu.roll(reach, shift=1, axis=0) * g_v_a
                          + pltpu.roll(reach, shift=H_PAD - 1, axis=0) * g_v_b)
                pred_h = (pltpu.roll(reach, shift=1, axis=1) * g_h_a
                          + pltpu.roll(reach, shift=W_PAD - 1, axis=1) * g_h_b)
                return jnp.maximum(reach, jnp.maximum(pred_v, pred_h))

            # reach_v / reach_h[r,c]: a valid monotone path from the centre whose
            # FIRST move is vertical / horizontal (the start cell is never checked,
            # exactly like __valid_path__).  Seeds sit at distance 1, the farthest
            # real cell at distance 6, so 5 relaxations suffice.
            reach_v = jnp.where(seed_v, free, 0.0)
            reach_h = jnp.where(seed_h, free, 0.0)
            for _ in range(MAX_TURN - 1):
                reach_v = relax(reach_v)
                reach_h = relax(reach_h)
            reachable = jnp.maximum(reach_v, reach_h)

            # Closest reachable banana; ties broken in row-major (.nonzero()) order.
            # vbit (vertical-first path exists) is a function of the cell, so it never
            # changes which cell wins the min.  A flagged centre (danger==1 or
            # barrier==1) always wins the min through the high cf field; in that case
            # the reference overwrites every action anyway, so losing the banana key
            # is harmless.
            vbit = jnp.where(reach_v > 0.0, 1.0, 0.0)
            valid = has_banana & (dist > 0.0) & (reachable > 0.0)
            key = jnp.where(valid, dist * 2048.0 + row * 256.0 + col * 2.0 + vbit,
                            BIG_KEY)
            cf = jnp.where(is_centre, hi, 0.0)
            combined = (3.0 - cf) * CF_SCALE + key

            # Per-board min: 3 sublane roll-min steps (all 8 rows of a slab belong to
            # the same board) + a masked +/-1,2,4 lane butterfly inside the slab.
            m = combined
            for s in (1, 2, 4):
                m = jnp.minimum(m, pltpu.roll(m, shift=s, axis=0))
            for s, sa, sb in seg:
                va = jnp.where(sa, pltpu.roll(m, shift=s, axis=1), BIG_COMBINED)
                vb = jnp.where(sb, pltpu.roll(m, shift=W_PAD - s, axis=1), BIG_COMBINED)
                m = jnp.minimum(m, jnp.minimum(va, vb))

            # Decode (exact f32 integer arithmetic, values < 2**24).
            cf_sel = 3.0 - jnp.floor(m * (1.0 / CF_SCALE))
            key_min = m - (3.0 - cf_sel) * CF_SCALE
            have_banana = key_min < BIG_KEY
            q1 = jnp.floor(key_min * 0.5)                 # dist*1024 + row*128 + col
            first_vert = (key_min - 2.0 * q1) > 0.5       # permutations: vertical first
            q2 = jnp.floor(q1 * (1.0 / 128.0))            # dist*8 + row
            col_sel = q1 - 128.0 * q2
            q3 = jnp.floor(q2 * 0.125)                    # dist
            row_sel = q2 - 8.0 * q3
            move = jnp.where(first_vert,
                             jnp.where(row_sel < R, W_, S_),
                             jnp.where(col_sel < R, A_, D_))

            q_e = quality_event(r_e, q3)
            q_b = quality_event(r_b, q3)
            Q = jnp.where(have_banana, jnp.where(act == move, q_b, q_e), Q_null)

            # Reference-code quirk reproduced exactly: the per-action danger/barrier
            # check always reads the CENTRE cell, so it applies to every action.
            danger_c = (cf_sel - 2.0 * jnp.floor(cf_sel * 0.5)) > 0.5
            barrier_c = cf_sel >= 2.0
            Q = jnp.where(danger_c, r_d, Q)
            Q = jnp.where(barrier_c, Q_null, Q)
            Q = jnp.where(act == STAY, Q_null, Q)

            q_ref[i] = Q.astype(jnp.float32)
            return carry

        if GB == 1:
            process_group(0, 0)
        else:
            lax.fori_loop(0, GB, process_group, 0)

    return kernel


class BrainDecisionAI:
    """JAX/Pallas port of MonkeyDQNTransfer's BrainDecisionAI (greedy banana AI)."""

    def __init__(self, gamma, r_b, r_e, r_d):
        self.gamma = float(gamma)
        self.r_b = float(r_b)
        self.r_e = float(r_e)
        self.r_d = float(r_d)
        self.Q_null = self.r_e / (1.0 - self.gamma)
        self.Q_ave = (self.r_b + 3 * self.r_e) \
            * (1 + self.gamma + self.gamma ** 2 + self.gamma ** 3) / 4 \
            + self.gamma ** 4 * self.Q_null

        gamma_, r_b_, r_e_, r_d_ = self.gamma, self.r_b, self.r_e, self.r_d

        def forward_batch(vision_b):                 # (B, C>=3, 7, 7) -> (B, 5)
            v = jnp.asarray(vision_b)
            B = v.shape[0]
            barrier = v[:, INDEX_BARRIER].astype(jnp.float32)
            danger = v[:, INDEX_DANGER].astype(jnp.float32)
            banana = v[:, INDEX_BANANA].astype(jnp.float32)
            # One f32 bit-plane per cell; the unused 4th channel is never shipped.
            code = ((barrier != 0.0).astype(jnp.float32)
                    + (danger != 0.0).astype(jnp.float32) * 2.0
                    + (banana != 0.0).astype(jnp.float32) * 4.0
                    + (danger == 1.0).astype(jnp.float32) * 8.0
                    + (barrier == 1.0).astype(jnp.float32) * 16.0)       # (B,7,7)
            code = jnp.pad(code, ((0, 0), (0, H_PAD - VISION), (0, SLAB - VISION)))

            # Lane-pack 16 boards per (8,128) tile; block GB groups per grid step,
            # keeping >=2 grid steps whenever possible so both v7x TCs get work.
            G = -(-B // LP)
            GB = 1 if G <= 1 else max(1, min(8, G // 2))
            G_pad = -(-G // GB) * GB
            B_pad = G_pad * LP
            code = jnp.pad(code, ((0, B_pad - B), (0, 0), (0, 0)))
            packed = (code.reshape(G_pad, LP, H_PAD, SLAB)
                      .transpose(0, 2, 1, 3)
                      .reshape(G_pad, H_PAD, W_PAD))

            kernel = _make_kernel(gamma_, r_b_, r_e_, r_d_, GB)
            out = pl.pallas_call(
                kernel,
                out_shape=jax.ShapeDtypeStruct((G_pad, H_PAD, W_PAD), jnp.float32),
                grid=(G_pad // GB,),
                in_specs=[pl.BlockSpec((GB, H_PAD, W_PAD), lambda g: (g, 0, 0))],
                out_specs=pl.BlockSpec((GB, H_PAD, W_PAD), lambda g: (g, 0, 0)),
                compiler_params=pltpu.CompilerParams(
                    dimension_semantics=("parallel",)),
            )(packed)
            # Row 0 of each group tile: 16 boards x 8 lanes (actions 0..4 are real).
            q = out[:, 0, :].reshape(B_pad, SLAB)[:B, :len(WASD)]
            return q

        self.forward_batch = jax.jit(forward_batch)

    def forward(self, s):
        food, vision = s            # `food` is unused by the reference forward
        return self.forward_batch(jnp.asarray(vision)[None])[0]


def _forward_reference(channels, gamma, r_b, r_e, r_d):
    """Pure numpy transcription of the PyTorch BrainDecisionAI.forward (cross-check)."""
    Q_null = r_e / (1.0 - gamma)
    Q_ave = (r_b + 3 * r_e) * (1 + gamma + gamma ** 2 + gamma ** 3) / 4 + gamma ** 4 * Q_null

    def quality_event(ir, turn):
        Q = ir + gamma * Q_ave
        for _ in range(turn - 1):
            Q = r_e + gamma * Q
        return Q

    def valid_path(path):
        pos = (RADIUS, RADIUS)
        for action in path:
            symbol = WASD[action]
            if symbol == 'a':
                pos = (pos[0], pos[1] - 1)
            elif symbol == 'd':
                pos = (pos[0], pos[1] + 1)
            elif symbol == 'w':
                pos = (pos[0] - 1, pos[1])
            elif symbol == 's':
                pos = (pos[0] + 1, pos[1])
            if not (channels[INDEX_DANGER, pos[0], pos[1]] == 0
                    and channels[INDEX_BARRIER, pos[0], pos[1]] == 0):
                return False
        return True

    def has_path(location):
        rel = (int(location[0]) - RADIUS, int(location[1]) - RADIUS)
        moves = []
        if rel[0] < 0:
            moves += [WASD.index('w')] * abs(rel[0])
        else:
            moves += [WASD.index('s')] * rel[0]
        if rel[1] < 0:
            moves += [WASD.index('a')] * abs(rel[1])
        else:
            moves += [WASD.index('d')] * rel[1]
        for perm in itertools.permutations(moves):
            if valid_path(perm):
                return True, tuple(perm)
        return False, tuple()

    banana_locs = np.argwhere(channels[INDEX_BANANA] != 0)
    banana_sort = sorted(
        (float(abs(int(loc[0]) - RADIUS) + abs(int(loc[1]) - RADIUS)), i,
         (int(loc[0]), int(loc[1])))
        for i, loc in enumerate(banana_locs))
    distance, move = 0, -1
    for _, _, loc in banana_sort:
        ok, path = has_path(loc)
        if ok and len(path) > 0:
            distance, move = len(path), path[0]
            break

    if distance > 0:
        Q = np.zeros(len(WASD), dtype=np.float64) + quality_event(r_e, distance)
        Q[move] = quality_event(r_b, distance)
    else:
        Q = np.zeros(len(WASD), dtype=np.float64) + Q_null

    for action in range(len(WASD)):
        pos = (RADIUS, RADIUS)      # reference bug reproduced: pos never moves
        if channels[INDEX_DANGER, pos[0], pos[1]] == 1:
            Q[action] = r_d
        if channels[INDEX_BARRIER, pos[0], pos[1]] == 1:
            Q[action] = Q_null
    Q[WASD.index(' ')] = Q_null
    return Q.astype(np.float32)


def _board(barrier_cells=(), danger_cells=(), banana_cells=()):
    v = np.zeros((N_CHANNELS, VISION, VISION), np.float32)
    for (r, c) in barrier_cells:
        v[INDEX_BARRIER, r, c] = 1.0
    for (r, c) in danger_cells:
        v[INDEX_DANGER, r, c] = 1.0
    for (r, c) in banana_cells:
        v[INDEX_BANANA, r, c] = 1.0
    return v


if __name__ == "__main__":
    key = jax.random.PRNGKey(0)
    kb, kd, kn = jax.random.split(key, 3)
    n_rand = 57
    barrier = (jax.random.uniform(kb, (n_rand, VISION, VISION)) < 0.12).astype(jnp.float32)
    danger = (jax.random.uniform(kd, (n_rand, VISION, VISION)) < 0.08).astype(jnp.float32)
    banana = (jax.random.uniform(kn, (n_rand, VISION, VISION)) < 0.08).astype(jnp.float32)
    extra = jnp.zeros((n_rand, VISION, VISION), jnp.float32)
    rand_boards = jnp.stack([barrier, danger, banana, extra], axis=1)     # (n_rand,4,7,7)

    hand_boards = np.stack([
        _board(banana_cells=[(3, 5)]),                                    # straight right
        _board(barrier_cells=[(2, 3)], banana_cells=[(1, 3), (3, 1)]),    # nearest blocked
        _board(danger_cells=[(3, 3)], banana_cells=[(3, 5)]),             # danger on centre
        _board(),                                                         # no bananas
        _board(barrier_cells=[(2, 3)], banana_cells=[(1, 5)]),            # horiz-first path
        _board(barrier_cells=[(3, 3)], banana_cells=[(3, 5)]),            # barrier on centre
        _board(barrier_cells=[(3, 3)], danger_cells=[(3, 3)],
               banana_cells=[(1, 1)]),                                    # both on centre
    ], axis=0)

    vision_batch = jnp.concatenate([jnp.asarray(hand_boards), rand_boards], axis=0)
    food = 3                                                              # unused by forward

    brain = BrainDecisionAI(gamma=0.9, r_b=7.0, r_e=-1.0, r_d=-20.0)
    Q_batch = jax.block_until_ready(brain.forward_batch(vision_batch))    # (B, 5)
    Q_single = jax.block_until_ready(brain.forward((food, vision_batch[0])))

    assert Q_batch.shape == (vision_batch.shape[0], len(WASD))
    assert Q_batch.dtype == jnp.float32
    for i in range(vision_batch.shape[0]):
        Q_ref = _forward_reference(np.asarray(vision_batch[i]), 0.9, 7.0, -1.0, -20.0)
        assert np.allclose(np.asarray(Q_batch[i]), Q_ref, rtol=1e-4, atol=1e-4), \
            (i, np.asarray(Q_batch[i]), Q_ref)
    assert np.allclose(np.asarray(Q_single), np.asarray(Q_batch[0]), rtol=1e-5, atol=1e-5)
    print("KERNEL_OK")
</pallas_src>

<mosaic_0001>
module attributes {stable_mosaic.version = 11 : i64} {
  func.func @kernel(%arg0: i32, %arg1: memref<2x8x128xf32, #tpu.memory_space<vmem>>, %arg2: memref<2x8x128xf32, #tpu.memory_space<vmem>>) attributes {dimension_semantics = [#tpu.dimension_semantics<parallel>], iteration_bounds = array<i64: 2>, scalar_prefetch = 0 : i64, scratch_operands = 0 : i64, tpu.core_type = #tpu.core_type<tc>, window_params = [{transform_indices = @transform_0, window_bounds = array<i64: 2, 8, 128>}, {transform_indices = @transform_1, window_bounds = array<i64: 2, 8, 128>}]} {
    %0 = tpu.iota {dimensions = array<i32: 0>} : vector<8x128xi32>
    %1 = arith.sitofp %0 : vector<8x128xi32> to vector<8x128xf32>
    %2 = tpu.iota {dimensions = array<i32: 1>} : vector<8x128xi32>
    %3 = arith.sitofp %2 : vector<8x128xi32> to vector<8x128xf32>
    %cst = arith.constant 1.250000e-01 : f32
    %4 = vector.broadcast %cst : f32 to vector<8x128xf32>
    %5 = arith.mulf %3, %4 : vector<8x128xf32>
    %6 = math.floor %5 : vector<8x128xf32>
    %cst_0 = arith.constant 8.000000e+00 : f32
    %7 = vector.broadcast %cst_0 : f32 to vector<8x128xf32>
    %8 = arith.mulf %7, %6 : vector<8x128xf32>
    %9 = arith.subf %3, %8 : vector<8x128xf32>
    %cst_1 = arith.constant 3.000000e+00 : f32
    %10 = vector.broadcast %cst_1 : f32 to vector<8x128xf32>
    %11 = arith.subf %1, %10 : vector<8x128xf32>
    %12 = math.absf %11 : vector<8x128xf32>
    %cst_2 = arith.constant 3.000000e+00 : f32
    %13 = vector.broadcast %cst_2 : f32 to vector<8x128xf32>
    %14 = arith.subf %9, %13 : vector<8x128xf32>
    %15 = math.absf %14 : vector<8x128xf32>
    %16 = arith.addf %12, %15 : vector<8x128xf32>
    %cst_3 = arith.constant 7.000000e+00 : f32
    %17 = vector.broadcast %cst_3 : f32 to vector<8x128xf32>
    %18 = arith.cmpf olt, %1, %17 : vector<8x128xf32>
    %cst_4 = arith.constant 7.000000e+00 : f32
    %19 = vector.broadcast %cst_4 : f32 to vector<8x128xf32>
    %20 = arith.cmpf olt, %9, %19 : vector<8x128xf32>
    %21 = arith.andi %18, %20 : vector<8x128xi1>
    %cst_5 = arith.constant 0.000000e+00 : f32
    %22 = vector.broadcast %cst_5 : f32 to vector<8x128xf32>
    %23 = arith.cmpf oeq, %12, %22 : vector<8x128xf32>
    %cst_6 = arith.constant 0.000000e+00 : f32
    %24 = vector.broadcast %cst_6 : f32 to vector<8x128xf32>
    %25 = arith.cmpf oeq, %15, %24 : vector<8x128xf32>
    %26 = arith.andi %23, %25 : vector<8x128xi1>
    %cst_7 = arith.constant 0.000000e+00 : f32
    %27 = vector.broadcast %cst_7 : f32 to vector<8x128xf32>
    %28 = arith.cmpf oeq, %15, %27 : vector<8x128xf32>
    %cst_8 = arith.constant 1.000000e+00 : f32
    %29 = vector.broadcast %cst_8 : f32 to vector<8x128xf32>
    %30 = arith.cmpf oeq, %12, %29 : vector<8x128xf32>
    %31 = arith.andi %28, %30 : vector<8x128xi1>
    %cst_9 = arith.constant 0.000000e+00 : f32
    %32 = vector.broadcast %cst_9 : f32 to vector<8x128xf32>
    %33 = arith.cmpf oeq, %12, %32 : vector<8x128xf32>
    %cst_10 = arith.constant 1.000000e+00 : f32
    %34 = vector.broadcast %cst_10 : f32 to vector<8x128xf32>
    %35 = arith.cmpf oeq, %15, %34 : vector<8x128xf32>
    %36 = arith.andi %33, %35 : vector<8x128xi1>
    %c1_i32 = arith.constant 1 : i32
    %37 = tpu.dynamic_rotate %12 by %c1_i32 dim 0 : vector<8x128xf32>, i32 -> vector<8x128xf32>
    %38 = arith.cmpf olt, %37, %12 : vector<8x128xf32>
    %c7_i32 = arith.constant 7 : i32
    %39 = tpu.dynamic_rotate %12 by %c7_i32 dim 0 : vector<8x128xf32>, i32 -> vector<8x128xf32>
    %40 = arith.cmpf olt, %39, %12 : vector<8x128xf32>
    %c1_i32_11 = arith.constant 1 : i32
    %41 = tpu.dynamic_rotate %15 by %c1_i32_11 dim 1 : vector<8x128xf32>, i32 -> vector<8x128xf32>
    %42 = arith.cmpf olt, %41, %15 : vector<8x128xf32>
    %c127_i32 = arith.constant 127 : i32
    %43 = tpu.dynamic_rotate %15 by %c127_i32 dim 1 : vector<8x128xf32>, i32 -> vector<8x128xf32>
    %44 = arith.cmpf olt, %43, %15 : vector<8x128xf32>
    %c1_i32_12 = arith.constant 1 : i32
    %45 = tpu.dynamic_rotate %3 by %c1_i32_12 dim 1 : vector<8x128xf32>, i32 -> vector<8x128xf32>
    %cst_13 = arith.constant 1.250000e-01 : f32
    %46 = vector.broadcast %cst_13 : f32 to vector<8x128xf32>
    %47 = arith.mulf %45, %46 : vector<8x128xf32>
    %48 = math.floor %47 : vector<8x128xf32>
    %49 = arith.cmpf oeq, %48, %6 : vector<8x128xf32>
    %c127_i32_14 = arith.constant 127 : i32
    %50 = tpu.dynamic_rotate %3 by %c127_i32_14 dim 1 : vector<8x128xf32>, i32 -> vector<8x128xf32>
    %cst_15 = arith.constant 1.250000e-01 : f32
    %51 = vector.broadcast %cst_15 : f32 to vector<8x128xf32>
    %52 = arith.mulf %50, %51 : vector<8x128xf32>
    %53 = math.floor %52 : vector<8x128xf32>
    %54 = arith.cmpf oeq, %53, %6 : vector<8x128xf32>
    %c2_i32 = arith.constant 2 : i32
    %55 = tpu.dynamic_rotate %3 by %c2_i32 dim 1 : vector<8x128xf32>, i32 -> vector<8x128xf32>
    %cst_16 = arith.constant 1.250000e-01 : f32
    %56 = vector.broadcast %cst_16 : f32 to vector<8x128xf32>
    %57 = arith.mulf %55, %56 : vector<8x128xf32>
    %58 = math.floor %57 : vector<8x128xf32>
    %59 = arith.cmpf oeq, %58, %6 : vector<8x128xf32>
    %c126_i32 = arith.constant 126 : i32
    %60 = tpu.dynamic_rotate %3 by %c126_i32 dim 1 : vector<8x128xf32>, i32 -> vector<8x128xf32>
    %cst_17 = arith.constant 1.250000e-01 : f32
    %61 = vector.broadcast %cst_17 : f32 to vector<8x128xf32>
    %62 = arith.mulf %60, %61 : vector<8x128xf32>
    %63 = math.floor %62 : vector<8x128xf32>
    %64 = arith.cmpf oeq, %63, %6 : vector<8x128xf32>
    %c4_i32 = arith.constant 4 : i32
    %65 = tpu.dynamic_rotate %3 by %c4_i32 dim 1 : vector<8x128xf32>, i32 -> vector<8x128xf32>
    %cst_18 = arith.constant 1.250000e-01 : f32
    %66 = vector.broadcast %cst_18 : f32 to vector<8x128xf32>
    %67 = arith.mulf %65, %66 : vector<8x128xf32>
    %68 = math.floor %67 : vector<8x128xf32>
    %69 = arith.cmpf oeq, %68, %6 : vector<8x128xf32>
    %c124_i32 = arith.constant 124 : i32
    %70 = tpu.dynamic_rotate %3 by %c124_i32 dim 1 : vector<8x128xf32>, i32 -> vector<8x128xf32>
    %cst_19 = arith.constant 1.250000e-01 : f32
    %71 = vector.broadcast %cst_19 : f32 to vector<8x128xf32>
    %72 = arith.mulf %70, %71 : vector<8x128xf32>
    %73 = math.floor %72 : vector<8x128xf32>
    %74 = arith.cmpf oeq, %73, %6 : vector<8x128xf32>
    %c0_i32 = arith.constant 0 : i32
    %c2_i32_20 = arith.constant 2 : i32
    %75 = arith.addi %c0_i32, %c2_i32_20 : i32
    %c1_i32_21 = arith.constant 1 : i32
    scf.for %arg3 = %c0_i32 to %75 step %c1_i32_21  : i32 {
      %76 = arith.index_cast %arg3 : i32 to index
      %c0 = arith.constant 0 : index
      %c0_23 = arith.constant 0 : index
      %77 = vector.load %arg1[%76, %c0, %c0_23] : memref<2x8x128xf32, #tpu.memory_space<vmem>>, vector<1x8x128xf32>
      %78 = vector.shape_cast %77 : vector<1x8x128xf32> to vector<8x128xf32>
      %cst_24 = arith.constant 1.250000e-01 : f32
      %79 = vector.broadcast %cst_24 : f32 to vector<8x128xf32>
      %80 = arith.mulf %78, %79 : vector<8x128xf32>
      %81 = math.floor %80 : vector<8x128xf32>
      %cst_25 = arith.constant 2.500000e-01 : f32
      %82 = vector.broadcast %cst_25 : f32 to vector<8x128xf32>
      %83 = arith.mulf %78, %82 : vector<8x128xf32>
      %84 = math.floor %83 : vector<8x128xf32>
      %cst_26 = arith.constant 4.000000e+00 : f32
      %85 = vector.broadcast %cst_26 : f32 to vector<8x128xf32>
      %86 = arith.mulf %85, %84 : vector<8x128xf32>
      %87 = arith.subf %78, %86 : vector<8x128xf32>
      %cst_27 = arith.constant 0.000000e+00 : f32
      %88 = vector.broadcast %cst_27 : f32 to vector<8x128xf32>
      %89 = arith.cmpf one, %87, %88 : vector<8x128xf32>
      %cst_28 = arith.constant 8.000000e+00 : f32
      %90 = vector.broadcast %cst_28 : f32 to vector<8x128xf32>
      %91 = arith.mulf %90, %81 : vector<8x128xf32>
      %92 = arith.subf %78, %91 : vector<8x128xf32>
      %cst_29 = arith.constant 4.000000e+00 : f32
      %93 = vector.broadcast %cst_29 : f32 to vector<8x128xf32>
      %94 = arith.cmpf oge, %92, %93 : vector<8x128xf32>
      %cst_30 = arith.constant dense<true> : vector<8x128xi1>
      %95 = arith.xori %89, %cst_30 : vector<8x128xi1>
      %96 = arith.andi %95, %21 : vector<8x128xi1>
      %cst_31 = arith.constant 1.000000e+00 : f32
      %cst_32 = arith.constant 0.000000e+00 : f32
      %97 = vector.broadcast %cst_31 : f32 to vector<8x128xf32>
      %98 = vector.broadcast %cst_32 : f32 to vector<8x128xf32>
      %99 = arith.select %96, %97, %98 : vector<8x128xi1>, vector<8x128xf32>
      %cst_33 = arith.constant 0.000000e+00 : f32
      %100 = vector.broadcast %cst_33 : f32 to vector<8x128xf32>
      %101 = arith.select %38, %99, %100 : vector<8x128xi1>, vector<8x128xf32>
      %cst_34 = arith.constant 0.000000e+00 : f32
      %102 = vector.broadcast %cst_34 : f32 to vector<8x128xf32>
      %103 = arith.select %40, %99, %102 : vector<8x128xi1>, vector<8x128xf32>
      %cst_35 = arith.constant 0.000000e+00 : f32
      %104 = vector.broadcast %cst_35 : f32 to vector<8x128xf32>
      %105 = arith.select %42, %99, %104 : vector<8x128xi1>, vector<8x128xf32>
      %cst_36 = arith.constant 0.000000e+00 : f32
      %106 = vector.broadcast %cst_36 : f32 to vector<8x128xf32>
      %107 = arith.select %44, %99, %106 : vector<8x128xi1>, vector<8x128xf32>
      %cst_37 = arith.constant 0.000000e+00 : f32
      %108 = vector.broadcast %cst_37 : f32 to vector<8x128xf32>
      %109 = arith.select %31, %99, %108 : vector<8x128xi1>, vector<8x128xf32>
      %cst_38 = arith.constant 0.000000e+00 : f32
      %110 = vector.broadcast %cst_38 : f32 to vector<8x128xf32>
      %111 = arith.select %36, %99, %110 : vector<8x128xi1>, vector<8x128xf32>
      %c1_i32_39 = arith.constant 1 : i32
      %112 = tpu.dynamic_rotate %109 by %c1_i32_39 dim 0 : vector<8x128xf32>, i32 -> vector<8x128xf32>
      %113 = arith.mulf %112, %101 : vector<8x128xf32>
      %c7_i32_40 = arith.constant 7 : i32
      %114 = tpu.dynamic_rotate %109 by %c7_i32_40 dim 0 : vector<8x128xf32>, i32 -> vector<8x128xf32>
      %115 = arith.mulf %114, %103 : vector<8x128xf32>
      %116 = arith.addf %113, %115 : vector<8x128xf32>
      %c1_i32_41 = arith.constant 1 : i32
      %117 = tpu.dynamic_rotate %109 by %c1_i32_41 dim 1 : vector<8x128xf32>, i32 -> vector<8x128xf32>
      %118 = arith.mulf %117, %105 : vector<8x128xf32>
      %c127_i32_42 = arith.constant 127 : i32
      %119 = tpu.dynamic_rotate %109 by %c127_i32_42 dim 1 : vector<8x128xf32>, i32 -> vector<8x128xf32>
      %120 = arith.mulf %119, %107 : vector<8x128xf32>
      %121 = arith.addf %118, %120 : vector<8x128xf32>
      %122 = arith.maximumf %116, %121 : vector<8x128xf32>
      %123 = arith.maximumf %109, %122 : vector<8x128xf32>
      %c1_i32_43 = arith.constant 1 : i32
      %124 = tpu.dynamic_rotate %111 by %c1_i32_43 dim 0 : vector<8x128xf32>, i32 -> vector<8x128xf32>
      %125 = arith.mulf %124, %101 : vector<8x128xf32>
      %c7_i32_44 = arith.constant 7 : i32
      %126 = tpu.dynamic_rotate %111 by %c7_i32_44 dim 0 : vector<8x128xf32>, i32 -> vector<8x128xf32>
      %127 = arith.mulf %126, %103 : vector<8x128xf32>
      %128 = arith.addf %125, %127 : vector<8x128xf32>
      %c1_i32_45 = arith.constant 1 : i32
      %129 = tpu.dynamic_rotate %111 by %c1_i32_45 dim 1 : vector<8x128xf32>, i32 -> vector<8x128xf32>
      %130 = arith.mulf %129, %105 : vector<8x128xf32>
      %c127_i32_46 = arith.constant 127 : i32
      %131 = tpu.dynamic_rotate %111 by %c127_i32_46 dim 1 : vector<8x128xf32>, i32 -> vector<8x128xf32>
      %132 = arith.mulf %131, %107 : vector<8x128xf32>
      %133 = arith.addf %130, %132 : vector<8x128xf32>
      %134 = arith.maximumf %128, %133 : vector<8x128xf32>
      %135 = arith.maximumf %111, %134 : vector<8x128xf32>
      %c1_i32_47 = arith.constant 1 : i32
      %136 = tpu.dynamic_rotate %123 by %c1_i32_47 dim 0 : vector<8x128xf32>, i32 -> vector<8x128xf32>
      %137 = arith.mulf %136, %101 : vector<8x128xf32>
      %c7_i32_48 = arith.constant 7 : i32
      %138 = tpu.dynamic_rotate %123 by %c7_i32_48 dim 0 : vector<8x128xf32>, i32 -> vector<8x128xf32>
      %139 = arith.mulf %138, %103 : vector<8x128xf32>
      %140 = arith.addf %137, %139 : vector<8x128xf32>
      %c1_i32_49 = arith.constant 1 : i32
      %141 = tpu.dynamic_rotate %123 by %c1_i32_49 dim 1 : vector<8x128xf32>, i32 -> vector<8x128xf32>
      %142 = arith.mulf %141, %105 : vector<8x128xf32>
      %c127_i32_50 = arith.constant 127 : i32
      %143 = tpu.dynamic_rotate %123 by %c127_i32_50 dim 1 : vector<8x128xf32>, i32 -> vector<8x128xf32>
      %144 = arith.mulf %143, %107 : vector<8x128xf32>
      %145 = arith.addf %142, %144 : vector<8x128xf32>
      %146 = arith.maximumf %140, %145 : vector<8x128xf32>
      %147 = arith.maximumf %123, %146 : vector<8x128xf32>
      %c1_i32_51 = arith.constant 1 : i32
      %148 = tpu.dynamic_rotate %135 by %c1_i32_51 dim 0 : vector<8x128xf32>, i32 -> vector<8x128xf32>
      %149 = arith.mulf %148, %101 : vector<8x128xf32>
      %c7_i32_52 = arith.constant 7 : i32
      %150 = tpu.dynamic_rotate %135 by %c7_i32_52 dim 0 : vector<8x128xf32>, i32 -> vector<8x128xf32>
      %151 = arith.mulf %150, %103 : vector<8x128xf32>
      %152 = arith.addf %149, %151 : vector<8x128xf32>
      %c1_i32_53 = arith.constant 1 : i32
      %153 = tpu.dynamic_rotate %135 by %c1_i32_53 dim 1 : vector<8x128xf32>, i32 -> vector<8x128xf32>
      %154 = arith.mulf %153, %105 : vector<8x128xf32>
      %c127_i32_54 = arith.constant 127 : i32
      %155 = tpu.dynamic_rotate %135 by %c127_i32_54 dim 1 : vector<8x128xf32>, i32 -> vector<8x128xf32>
      %156 = arith.mulf %155, %107 : vector<8x128xf32>
      %157 = arith.addf %154, %156 : vector<8x128xf32>
      %158 = arith.maximumf %152, %157 : vector<8x128xf32>
      %159 = arith.maximumf %135, %158 : vector<8x128xf32>
      %c1_i32_55 = arith.constant 1 : i32
      %160 = tpu.dynamic_rotate %147 by %c1_i32_55 dim 0 : vector<8x128xf32>, i32 -> vector<8x128xf32>
      %161 = arith.mulf %160, %101 : vector<8x128xf32>
      %c7_i32_56 = arith.constant 7 : i32
      %162 = tpu.dynamic_rotate %147 by %c7_i32_56 dim 0 : vector<8x128xf32>, i32 -> vector<8x128xf32>
      %163 = arith.mulf %162, %103 : vector<8x128xf32>
      %164 = arith.addf %161, %163 : vector<8x128xf32>
      %c1_i32_57 = arith.constant 1 : i32
      %165 = tpu.dynamic_rotate %147 by %c1_i32_57 dim 1 : vector<8x128xf32>, i32 -> vector<8x128xf32>
      %166 = arith.mulf %165, %105 : vector<8x128xf32>
      %c127_i32_58 = arith.constant 127 : i32
      %167 = tpu.dynamic_rotate %147 by %c127_i32_58 dim 1 : vector<8x128xf32>, i32 -> vector<8x128xf32>
      %168 = arith.mulf %167, %107 : vector<8x128xf32>
      %169 = arith.addf %166, %168 : vector<8x128xf32>
      %170 = arith.maximumf %164, %169 : vector<8x128xf32>
      %171 = arith.maximumf %147, %170 : vector<8x128xf32>
      %c1_i32_59 = arith.constant 1 : i32
      %172 = tpu.dynamic_rotate %159 by %c1_i32_59 dim 0 : vector<8x128xf32>, i32 -> vector<8x128xf32>
      %173 = arith.mulf %172, %101 : vector<8x128xf32>
      %c7_i32_60 = arith.constant 7 : i32
      %174 = tpu.dynamic_rotate %159 by %c7_i32_60 dim 0 : vector<8x128xf32>, i32 -> vector<8x128xf32>
      %175 = arith.mulf %174, %103 : vector<8x128xf32>
      %176 = arith.addf %173, %175 : vector<8x128xf32>
      %c1_i32_61 = arith.constant 1 : i32
      %177 = tpu.dynamic_rotate %159 by %c1_i32_61 dim 1 : vector<8x128xf32>, i32 -> vector<8x128xf32>
      %178 = arith.mulf %177, %105 : vector<8x128xf32>
      %c127_i32_62 = arith.constant 127 : i32
      %179 = tpu.dynamic_rotate %159 by %c127_i32_62 dim 1 : vector<8x128xf32>, i32 -> vector<8x128xf32>
      %180 = arith.mulf %179, %107 : vector<8x128xf32>
      %181 = arith.addf %178, %180 : vector<8x128xf32>
      %182 = arith.maximumf %176, %181 : vector<8x128xf32>
      %183 = arith.maximumf %159, %182 : vector<8x128xf32>
      %c1_i32_63 = arith.constant 1 : i32
      %184 = tpu.dynamic_rotate %171 by %c1_i32_63 dim 0 : vector<8x128xf32>, i32 -> vector<8x128xf32>
      %185 = arith.mulf %184, %101 : vector<8x128xf32>
      %c7_i32_64 = arith.constant 7 : i32
      %186 = tpu.dynamic_rotate %171 by %c7_i32_64 dim 0 : vector<8x128xf32>, i32 -> vector<8x128xf32>
      %187 = arith.mulf %186, %103 : vector<8x128xf32>
      %188 = arith.addf %185, %187 : vector<8x128xf32>
      %c1_i32_65 = arith.constant 1 : i32
      %189 = tpu.dynamic_rotate %171 by %c1_i32_65 dim 1 : vector<8x128xf32>, i32 -> vector<8x128xf32>
      %190 = arith.mulf %189, %105 : vector<8x128xf32>
      %c127_i32_66 = arith.constant 127 : i32
      %191 = tpu.dynamic_rotate %171 by %c127_i32_66 dim 1 : vector<8x128xf32>, i32 -> vector<8x128xf32>
      %192 = arith.mulf %191, %107 : vector<8x128xf32>
      %193 = arith.addf %190, %192 : vector<8x128xf32>
      %194 = arith.maximumf %188, %193 : vector<8x128xf32>
      %195 = arith.maximumf %171, %194 : vector<8x128xf32>
      %c1_i32_67 = arith.constant 1 : i32
      %196 = tpu.dynamic_rotate %183 by %c1_i32_67 dim 0 : vector<8x128xf32>, i32 -> vector<8x128xf32>
      %197 = arith.mulf %196, %101 : vector<8x128xf32>
      %c7_i32_68 = arith.constant 7 : i32
      %198 = tpu.dynamic_rotate %183 by %c7_i32_68 dim 0 : vector<8x128xf32>, i32 -> vector<8x128xf32>
      %199 = arith.mulf %198, %103 : vector<8x128xf32>
      %200 = arith.addf %197, %199 : vector<8x128xf32>
      %c1_i32_69 = arith.constant 1 : i32
      %201 = tpu.dynamic_rotate %183 by %c1_i32_69 dim 1 : vector<8x128xf32>, i32 -> vector<8x128xf32>
      %202 = arith.mulf %201, %105 : vector<8x128xf32>
      %c127_i32_70 = arith.constant 127 : i32
      %203 = tpu.dynamic_rotate %183 by %c127_i32_70 dim 1 : vector<8x128xf32>, i32 -> vector<8x128xf32>
      %204 = arith.mulf %203, %107 : vector<8x128xf32>
      %205 = arith.addf %202, %204 : vector<8x128xf32>
      %206 = arith.maximumf %200, %205 : vector<8x128xf32>
      %207 = arith.maximumf %183, %206 : vector<8x128xf32>
      %c1_i32_71 = arith.constant 1 : i32
      %208 = tpu.dynamic_rotate %195 by %c1_i32_71 dim 0 : vector<8x128xf32>, i32 -> vector<8x128xf32>
      %209 = arith.mulf %208, %101 : vector<8x128xf32>
      %c7_i32_72 = arith.constant 7 : i32
      %210 = tpu.dynamic_rotate %195 by %c7_i32_72 dim 0 : vector<8x128xf32>, i32 -> vector<8x128xf32>
      %211 = arith.mulf %210, %103 : vector<8x128xf32>
      %212 = arith.addf %209, %211 : vector<8x128xf32>
      %c1_i32_73 = arith.constant 1 : i32
      %213 = tpu.dynamic_rotate %195 by %c1_i32_73 dim 1 : vector<8x128xf32>, i32 -> vector<8x128xf32>
      %214 = arith.mulf %213, %105 : vector<8x128xf32>
      %c127_i32_74 = arith.constant 127 : i32
      %215 = tpu.dynamic_rotate %195 by %c127_i32_74 dim 1 : vector<8x128xf32>, i32 -> vector<8x128xf32>
      %216 = arith.mulf %215, %107 : vector<8x128xf32>
      %217 = arith.addf %214, %216 : vector<8x128xf32>
      %218 = arith.maximumf %212, %217 : vector<8x128xf32>
      %219 = arith.maximumf %195, %218 : vector<8x128xf32>
      %c1_i32_75 = arith.constant 1 : i32
      %220 = tpu.dynamic_rotate %207 by %c1_i32_75 dim 0 : vector<8x128xf32>, i32 -> vector<8x128xf32>
      %221 = arith.mulf %220, %101 : vector<8x128xf32>
      %c7_i32_76 = arith.constant 7 : i32
      %222 = tpu.dynamic_rotate %207 by %c7_i32_76 dim 0 : vector<8x128xf32>, i32 -> vector<8x128xf32>
      %223 = arith.mulf %222, %103 : vector<8x128xf32>
      %224 = arith.addf %221, %223 : vector<8x128xf32>
      %c1_i32_77 = arith.constant 1 : i32
      %225 = tpu.dynamic_rotate %207 by %c1_i32_77 dim 1 : vector<8x128xf32>, i32 -> vector<8x128xf32>
      %226 = arith.mulf %225, %105 : vector<8x128xf32>
      %c127_i32_78 = arith.constant 127 : i32
      %227 = tpu.dynamic_rotate %207 by %c127_i32_78 dim 1 : vector<8x128xf32>, i32 -> vector<8x128xf32>
      %228 = arith.mulf %227, %107 : vector<8x128xf32>
      %229 = arith.addf %226, %228 : vector<8x128xf32>
      %230 = arith.maximumf %224, %229 : vector<8x128xf32>
      %231 = arith.maximumf %207, %230 : vector<8x128xf32>
      %232 = arith.maximumf %219, %231 : vector<8x128xf32>
      %cst_79 = arith.constant 0.000000e+00 : f32
      %233 = vector.broadcast %cst_79 : f32 to vector<8x128xf32>
      %234 = arith.cmpf ogt, %219, %233 : vector<8x128xf32>
      %cst_80 = arith.constant 1.000000e+00 : f32
      %cst_81 = arith.constant 0.000000e+00 : f32
      %235 = vector.broadcast %cst_80 : f32 to vector<8x128xf32>
      %236 = vector.broadcast %cst_81 : f32 to vector<8x128xf32>
      %237 = arith.select %234, %235, %236 : vector<8x128xi1>, vector<8x128xf32>
      %cst_82 = arith.constant 0.000000e+00 : f32
      %238 = vector.broadcast %cst_82 : f32 to vector<8x128xf32>
      %239 = arith.cmpf ogt, %16, %238 : vector<8x128xf32>
      %240 = arith.andi %94, %239 : vector<8x128xi1>
      %cst_83 = arith.constant 0.000000e+00 : f32
      %241 = vector.broadcast %cst_83 : f32 to vector<8x128xf32>
      %242 = arith.cmpf ogt, %232, %241 : vector<8x128xf32>
      %243 = arith.andi %240, %242 : vector<8x128xi1>
      %cst_84 = arith.constant 2.048000e+03 : f32
      %244 = vector.broadcast %cst_84 : f32 to vector<8x128xf32>
      %245 = arith.mulf %16, %244 : vector<8x128xf32>
      %cst_85 = arith.constant 2.560000e+02 : f32
      %246 = vector.broadcast %cst_85 : f32 to vector<8x128xf32>
      %247 = arith.mulf %1, %246 : vector<8x128xf32>
      %248 = arith.addf %245, %247 : vector<8x128xf32>
      %cst_86 = arith.constant 2.000000e+00 : f32
      %249 = vector.broadcast %cst_86 : f32 to vector<8x128xf32>
      %250 = arith.mulf %9, %249 : vector<8x128xf32>
      %251 = arith.addf %248, %250 : vector<8x128xf32>
      %252 = arith.addf %251, %237 : vector<8x128xf32>
      %cst_87 = arith.constant 1.638400e+04 : f32
      %253 = vector.broadcast %cst_87 : f32 to vector<8x128xf32>
      %254 = arith.select %243, %252, %253 : vector<8x128xi1>, vector<8x128xf32>
      %cst_88 = arith.constant 0.000000e+00 : f32
      %255 = vector.broadcast %cst_88 : f32 to vector<8x128xf32>
      %256 = arith.select %26, %81, %255 : vector<8x128xi1>, vector<8x128xf32>
      %cst_89 = arith.constant 3.000000e+00 : f32
      %257 = vector.broadcast %cst_89 : f32 to vector<8x128xf32>
      %258 = arith.subf %257, %256 : vector<8x128xf32>
      %cst_90 = arith.constant 2.621440e+05 : f32
      %259 = vector.broadcast %cst_90 : f32 to vector<8x128xf32>
      %260 = arith.mulf %258, %259 : vector<8x128xf32>
      %261 = arith.addf %260, %254 : vector<8x128xf32>
      %c1_i32_91 = arith.constant 1 : i32
      %262 = tpu.dynamic_rotate %261 by %c1_i32_91 dim 0 : vector<8x128xf32>, i32 -> vector<8x128xf32>
      %263 = arith.minimumf %261, %262 : vector<8x128xf32>
      %c2_i32_92 = arith.constant 2 : i32
      %264 = tpu.dynamic_rotate %263 by %c2_i32_92 dim 0 : vector<8x128xf32>, i32 -> vector<8x128xf32>
      %265 = arith.minimumf %263, %264 : vector<8x128xf32>
      %c4_i32_93 = arith.constant 4 : i32
      %266 = tpu.dynamic_rotate %265 by %c4_i32_93 dim 0 : vector<8x128xf32>, i32 -> vector<8x128xf32>
      %267 = arith.minimumf %265, %266 : vector<8x128xf32>
      %c1_i32_94 = arith.constant 1 : i32
      %268 = tpu.dynamic_rotate %267 by %c1_i32_94 dim 1 : vector<8x128xf32>, i32 -> vector<8x128xf32>
      %cst_95 = arith.constant 0x49800000 : f32
      %269 = vector.broadcast %cst_95 : f32 to vector<8x128xf32>
      %270 = arith.select %49, %268, %269 : vector<8x128xi1>, vector<8x128xf32>
      %c127_i32_96 = arith.constant 127 : i32
      %271 = tpu.dynamic_rotate %267 by %c127_i32_96 dim 1 : vector<8x128xf32>, i32 -> vector<8x128xf32>
      %cst_97 = arith.constant 0x49800000 : f32
      %272 = vector.broadcast %cst_97 : f32 to vector<8x128xf32>
      %273 = arith.select %54, %271, %272 : vector<8x128xi1>, vector<8x128xf32>
      %274 = arith.minimumf %270, %273 : vector<8x128xf32>
      %275 = arith.minimumf %267, %274 : vector<8x128xf32>
      %c2_i32_98 = arith.constant 2 : i32
      %276 = tpu.dynamic_rotate %275 by %c2_i32_98 dim 1 : vector<8x128xf32>, i32 -> vector<8x128xf32>
      %cst_99 = arith.constant 0x49800000 : f32
      %277 = vector.broadcast %cst_99 : f32 to vector<8x128xf32>
      %278 = arith.select %59, %276, %277 : vector<8x128xi1>, vector<8x128xf32>
      %c126_i32_100 = arith.constant 126 : i32
      %279 = tpu.dynamic_rotate %275 by %c126_i32_100 dim 1 : vector<8x128xf32>, i32 -> vector<8x128xf32>
      %cst_101 = arith.constant 0x49800000 : f32
      %280 = vector.broadcast %cst_101 : f32 to vector<8x128xf32>
      %281 = arith.select %64, %279, %280 : vector<8x128xi1>, vector<8x128xf32>
      %282 = arith.minimumf %278, %281 : vector<8x128xf32>
      %283 = arith.minimumf %275, %282 : vector<8x128xf32>
      %c4_i32_102 = arith.constant 4 : i32
      %284 = tpu.dynamic_rotate %283 by %c4_i32_102 dim 1 : vector<8x128xf32>, i32 -> vector<8x128xf32>
      %cst_103 = arith.constant 0x49800000 : f32
      %285 = vector.broadcast %cst_103 : f32 to vector<8x128xf32>
      %286 = arith.select %69, %284, %285 : vector<8x128xi1>, vector<8x128xf32>
      %c124_i32_104 = arith.constant 124 : i32
      %287 = tpu.dynamic_rotate %283 by %c124_i32_104 dim 1 : vector<8x128xf32>, i32 -> vector<8x128xf32>
      %cst_105 = arith.constant 0x49800000 : f32
      %288 = vector.broadcast %cst_105 : f32 to vector<8x128xf32>
      %289 = arith.select %74, %287, %288 : vector<8x128xi1>, vector<8x128xf32>
      %290 = arith.minimumf %286, %289 : vector<8x128xf32>
      %291 = arith.minimumf %283, %290 : vector<8x128xf32>
      %cst_106 = arith.constant 3.81469727E-6 : f32
      %292 = vector.broadcast %cst_106 : f32 to vector<8x128xf32>
      %293 = arith.mulf %291, %292 : vector<8x128xf32>
      %294 = math.floor %293 : vector<8x128xf32>
      %cst_107 = arith.constant 3.000000e+00 : f32
      %295 = vector.broadcast %cst_107 : f32 to vector<8x128xf32>
      %296 = arith.subf %295, %294 : vector<8x128xf32>
      %cst_108 = arith.constant 3.000000e+00 : f32
      %297 = vector.broadcast %cst_108 : f32 to vector<8x128xf32>
      %298 = arith.subf %297, %296 : vector<8x128xf32>
      %cst_109 = arith.constant 2.621440e+05 : f32
      %299 = vector.broadcast %cst_109 : f32 to vector<8x128xf32>
      %300 = arith.mulf %298, %299 : vector<8x128xf32>
      %301 = arith.subf %291, %300 : vector<8x128xf32>
      %cst_110 = arith.constant 1.638400e+04 : f32
      %302 = vector.broadcast %cst_110 : f32 to vector<8x128xf32>
      %303 = arith.cmpf olt, %301, %302 : vector<8x128xf32>
      %cst_111 = arith.constant 5.000000e-01 : f32
      %304 = vector.broadcast %cst_111 : f32 to vector<8x128xf32>
      %305 = arith.mulf %301, %304 : vector<8x128xf32>
      %306 = math.floor %305 : vector<8x128xf32>
      %cst_112 = arith.constant 2.000000e+00 : f32
      %307 = vector.broadcast %cst_112 : f32 to vector<8x128xf32>
      %308 = arith.mulf %307, %306 : vector<8x128xf32>
      %309 = arith.subf %301, %308 : vector<8x128xf32>
      %cst_113 = arith.constant 5.000000e-01 : f32
      %310 = vector.broadcast %cst_113 : f32 to vector<8x128xf32>
      %311 = arith.cmpf ogt, %309, %310 : vector<8x128xf32>
      %cst_114 = arith.constant 7.812500e-03 : f32
      %312 = vector.broadcast %cst_114 : f32 to vector<8x128xf32>
      %313 = arith.mulf %306, %312 : vector<8x128xf32>
      %314 = math.floor %313 : vector<8x128xf32>
      %cst_115 = arith.constant 1.280000e+02 : f32
      %315 = vector.broadcast %cst_115 : f32 to vector<8x128xf32>
      %316 = arith.mulf %315, %314 : vector<8x128xf32>
      %317 = arith.subf %306, %316 : vector<8x128xf32>
      %cst_116 = arith.constant 1.250000e-01 : f32
      %318 = vector.broadcast %cst_116 : f32 to vector<8x128xf32>
      %319 = arith.mulf %314, %318 : vector<8x128xf32>
      %320 = math.floor %319 : vector<8x128xf32>
      %cst_117 = arith.constant 8.000000e+00 : f32
      %321 = vector.broadcast %cst_117 : f32 to vector<8x128xf32>
      %322 = arith.mulf %321, %320 : vector<8x128xf32>
      %323 = arith.subf %314, %322 : vector<8x128xf32>
      %cst_118 = arith.constant 3.000000e+00 : f32
      %324 = vector.broadcast %cst_118 : f32 to vector<8x128xf32>
      %325 = arith.cmpf olt, %323, %324 : vector<8x128xf32>
      %cst_119 = arith.constant 0.000000e+00 : f32
      %cst_120 = arith.constant 2.000000e+00 : f32
      %326 = vector.broadcast %cst_119 : f32 to vector<8x128xf32>
      %327 = vector.broadcast %cst_120 : f32 to vector<8x128xf32>
      %328 = arith.select %325, %326, %327 : vector<8x128xi1>, vector<8x128xf32>
      %cst_121 = arith.constant 3.000000e+00 : f32
      %329 = vector.broadcast %cst_121 : f32 to vector<8x128xf32>
      %330 = arith.cmpf olt, %317, %329 : vector<8x128xf32>
      %cst_122 = arith.constant 1.000000e+00 : f32
      %cst_123 = arith.constant 3.000000e+00 : f32
      %331 = vector.broadcast %cst_122 : f32 to vector<8x128xf32>
      %332 = vector.broadcast %cst_123 : f32 to vector<8x128xf32>
      %333 = arith.select %330, %331, %332 : vector<8x128xi1>, vector<8x128xf32>
      %334 = arith.select %311, %328, %333 : vector<8x128xi1>, vector<8x128xf32>
      %cst_124 = arith.constant 1.000000e+00 : f32
      %335 = vector.broadcast %cst_124 : f32 to vector<8x128xf32>
      %336 = arith.subf %320, %335 : vector<8x128xf32>
      %cst_125 = arith.constant 0.000000e+00 : f32
      %337 = vector.broadcast %cst_125 : f32 to vector<8x128xf32>
      %338 = arith.cmpf ogt, %336, %337 : vector<8x128xf32>
      %cst_126 = arith.constant -4.428820e+00 : f32
      %cst_127 = arith.constant -3.809800e+00 : f32
      %339 = vector.broadcast %cst_126 : f32 to vector<8x128xf32>
      %340 = vector.broadcast %cst_127 : f32 to vector<8x128xf32>
      %341 = arith.select %338, %339, %340 : vector<8x128xi1>, vector<8x128xf32>
      %cst_128 = arith.constant 1.000000e+00 : f32
      %342 = vector.broadcast %cst_128 : f32 to vector<8x128xf32>
      %343 = arith.subf %320, %342 : vector<8x128xf32>
      %cst_129 = arith.constant 1.000000e+00 : f32
      %344 = vector.broadcast %cst_129 : f32 to vector<8x128xf32>
      %345 = arith.cmpf ogt, %343, %344 : vector<8x128xf32>
      %cst_130 = arith.constant 0.899999976 : f32
      %346 = vector.broadcast %cst_130 : f32 to vector<8x128xf32>
      %347 = arith.mulf %346, %341 : vector<8x128xf32>
      %cst_131 = arith.constant -1.000000e+00 : f32
      %348 = vector.broadcast %cst_131 : f32 to vector<8x128xf32>
      %349 = arith.addf %348, %347 : vector<8x128xf32>
      %350 = arith.select %345, %349, %341 : vector<8x128xi1>, vector<8x128xf32>
      %cst_132 = arith.constant 1.000000e+00 : f32
      %351 = vector.broadcast %cst_132 : f32 to vector<8x128xf32>
      %352 = arith.subf %320, %351 : vector<8x128xf32>
      %cst_133 = arith.constant 2.000000e+00 : f32
      %353 = vector.broadcast %cst_133 : f32 to vector<8x128xf32>
      %354 = arith.cmpf ogt, %352, %353 : vector<8x128xf32>
      %cst_134 = arith.constant 0.899999976 : f32
      %355 = vector.broadcast %cst_134 : f32 to vector<8x128xf32>
      %356 = arith.mulf %355, %350 : vector<8x128xf32>
      %cst_135 = arith.constant -1.000000e+00 : f32
      %357 = vector.broadcast %cst_135 : f32 to vector<8x128xf32>
      %358 = arith.addf %357, %356 : vector<8x128xf32>
      %359 = arith.select %354, %358, %350 : vector<8x128xi1>, vector<8x128xf32>
      %cst_136 = arith.constant 1.000000e+00 : f32
      %360 = vector.broadcast %cst_136 : f32 to vector<8x128xf32>
      %361 = arith.subf %320, %360 : vector<8x128xf32>
      %cst_137 = arith.constant 3.000000e+00 : f32
      %362 = vector.broadcast %cst_137 : f32 to vector<8x128xf32>
      %363 = arith.cmpf ogt, %361, %362 : vector<8x128xf32>
      %cst_138 = arith.constant 0.899999976 : f32
      %364 = vector.broadcast %cst_138 : f32 to vector<8x128xf32>
      %365 = arith.mulf %364, %359 : vector<8x128xf32>
      %cst_139 = arith.constant -1.000000e+00 : f32
      %366 = vector.broadcast %cst_139 : f32 to vector<8x128xf32>
      %367 = arith.addf %366, %365 : vector<8x128xf32>
      %368 = arith.select %363, %367, %359 : vector<8x128xi1>, vector<8x128xf32>
      %cst_140 = arith.constant 1.000000e+00 : f32
      %369 = vector.broadcast %cst_140 : f32 to vector<8x128xf32>
      %370 = arith.subf %320, %369 : vector<8x128xf32>
      %cst_141 = arith.constant 4.000000e+00 : f32
      %371 = vector.broadcast %cst_141 : f32 to vector<8x128xf32>
      %372 = arith.cmpf ogt, %370, %371 : vector<8x128xf32>
      %cst_142 = arith.constant 0.899999976 : f32
      %373 = vector.broadcast %cst_142 : f32 to vector<8x128xf32>
      %374 = arith.mulf %373, %368 : vector<8x128xf32>
      %cst_143 = arith.constant -1.000000e+00 : f32
      %375 = vector.broadcast %cst_143 : f32 to vector<8x128xf32>
      %376 = arith.addf %375, %374 : vector<8x128xf32>
      %377 = arith.select %372, %376, %368 : vector<8x128xi1>, vector<8x128xf32>
      %cst_144 = arith.constant 1.000000e+00 : f32
      %378 = vector.broadcast %cst_144 : f32 to vector<8x128xf32>
      %379 = arith.subf %320, %378 : vector<8x128xf32>
      %cst_145 = arith.constant 0.000000e+00 : f32
      %380 = vector.broadcast %cst_145 : f32 to vector<8x128xf32>
      %381 = arith.cmpf ogt, %379, %380 : vector<8x128xf32>
      %cst_146 = arith.constant 2.771180e+00 : f32
      %cst_147 = arith.constant 4.190200e+00 : f32
      %382 = vector.broadcast %cst_146 : f32 to vector<8x128xf32>
      %383 = vector.broadcast %cst_147 : f32 to vector<8x128xf32>
      %384 = arith.select %381, %382, %383 : vector<8x128xi1>, vector<8x128xf32>
      %cst_148 = arith.constant 1.000000e+00 : f32
      %385 = vector.broadcast %cst_148 : f32 to vector<8x128xf32>
      %386 = arith.subf %320, %385 : vector<8x128xf32>
      %cst_149 = arith.constant 1.000000e+00 : f32
      %387 = vector.broadcast %cst_149 : f32 to vector<8x128xf32>
      %388 = arith.cmpf ogt, %386, %387 : vector<8x128xf32>
      %cst_150 = arith.constant 0.899999976 : f32
      %389 = vector.broadcast %cst_150 : f32 to vector<8x128xf32>
      %390 = arith.mulf %389, %384 : vector<8x128xf32>
      %cst_151 = arith.constant -1.000000e+00 : f32
      %391 = vector.broadcast %cst_151 : f32 to vector<8x128xf32>
      %392 = arith.addf %391, %390 : vector<8x128xf32>
      %393 = arith.select %388, %392, %384 : vector<8x128xi1>, vector<8x128xf32>
      %cst_152 = arith.constant 1.000000e+00 : f32
      %394 = vector.broadcast %cst_152 : f32 to vector<8x128xf32>
      %395 = arith.subf %320, %394 : vector<8x128xf32>
      %cst_153 = arith.constant 2.000000e+00 : f32
      %396 = vector.broadcast %cst_153 : f32 to vector<8x128xf32>
      %397 = arith.cmpf ogt, %395, %396 : vector<8x128xf32>
      %cst_154 = arith.constant 0.899999976 : f32
      %398 = vector.broadcast %cst_154 : f32 to vector<8x128xf32>
      %399 = arith.mulf %398, %393 : vector<8x128xf32>
      %cst_155 = arith.constant -1.000000e+00 : f32
      %400 = vector.broadcast %cst_155 : f32 to vector<8x128xf32>
      %401 = arith.addf %400, %399 : vector<8x128xf32>
      %402 = arith.select %397, %401, %393 : vector<8x128xi1>, vector<8x128xf32>
      %cst_156 = arith.constant 1.000000e+00 : f32
      %403 = vector.broadcast %cst_156 : f32 to vector<8x128xf32>
      %404 = arith.subf %320, %403 : vector<8x128xf32>
      %cst_157 = arith.constant 3.000000e+00 : f32
      %405 = vector.broadcast %cst_157 : f32 to vector<8x128xf32>
      %406 = arith.cmpf ogt, %404, %405 : vector<8x128xf32>
      %cst_158 = arith.constant 0.899999976 : f32
      %407 = vector.broadcast %cst_158 : f32 to vector<8x128xf32>
      %408 = arith.mulf %407, %402 : vector<8x128xf32>
      %cst_159 = arith.constant -1.000000e+00 : f32
      %409 = vector.broadcast %cst_159 : f32 to vector<8x128xf32>
      %410 = arith.addf %409, %408 : vector<8x128xf32>
      %411 = arith.select %406, %410, %402 : vector<8x128xi1>, vector<8x128xf32>
      %cst_160 = arith.constant 1.000000e+00 : f32
      %412 = vector.broadcast %cst_160 : f32 to vector<8x128xf32>
      %413 = arith.subf %320, %412 : vector<8x128xf32>
      %cst_161 = arith.constant 4.000000e+00 : f32
      %414 = vector.broadcast %cst_161 : f32 to vector<8x128xf32>
      %415 = arith.cmpf ogt, %413, %414 : vector<8x128xf32>
      %cst_162 = arith.constant 0.899999976 : f32
      %416 = vector.broadcast %cst_162 : f32 to vector<8x128xf32>
      %417 = arith.mulf %416, %411 : vector<8x128xf32>
      %cst_163 = arith.constant -1.000000e+00 : f32
      %418 = vector.broadcast %cst_163 : f32 to vector<8x128xf32>
      %419 = arith.addf %418, %417 : vector<8x128xf32>
      %420 = arith.select %415, %419, %411 : vector<8x128xi1>, vector<8x128xf32>
      %421 = arith.cmpf oeq, %9, %334 : vector<8x128xf32>
      %422 = arith.select %421, %420, %377 : vector<8x128xi1>, vector<8x128xf32>
      %cst_164 = arith.constant -1.000000e+01 : f32
      %423 = vector.broadcast %cst_164 : f32 to vector<8x128xf32>
      %424 = arith.select %303, %422, %423 : vector<8x128xi1>, vector<8x128xf32>
      %cst_165 = arith.constant 5.000000e-01 : f32
      %425 = vector.broadcast %cst_165 : f32 to vector<8x128xf32>
      %426 = arith.mulf %296, %425 : vector<8x128xf32>
      %427 = math.floor %426 : vector<8x128xf32>
      %cst_166 = arith.constant 2.000000e+00 : f32
      %428 = vector.broadcast %cst_166 : f32 to vector<8x128xf32>
      %429 = arith.mulf %428, %427 : vector<8x128xf32>
      %430 = arith.subf %296, %429 : vector<8x128xf32>
      %cst_167 = arith.constant 5.000000e-01 : f32
      %431 = vector.broadcast %cst_167 : f32 to vector<8x128xf32>
      %432 = arith.cmpf ogt, %430, %431 : vector<8x128xf32>
      %cst_168 = arith.constant 2.000000e+00 : f32
      %433 = vector.broadcast %cst_168 : f32 to vector<8x128xf32>
      %434 = arith.cmpf oge, %296, %433 : vector<8x128xf32>
      %cst_169 = arith.constant -2.000000e+01 : f32
      %435 = vector.broadcast %cst_169 : f32 to vector<8x128xf32>
      %436 = arith.select %432, %435, %424 : vector<8x128xi1>, vector<8x128xf32>
      %cst_170 = arith.constant -1.000000e+01 : f32
      %437 = vector.broadcast %cst_170 : f32 to vector<8x128xf32>
      %438 = arith.select %434, %437, %436 : vector<8x128xi1>, vector<8x128xf32>
      %cst_171 = arith.constant 4.000000e+00 : f32
      %439 = vector.broadcast %cst_171 : f32 to vector<8x128xf32>
      %440 = arith.cmpf oeq, %9, %439 : vector<8x128xf32>
      %cst_172 = arith.constant -1.000000e+01 : f32
      %441 = vector.broadcast %cst_172 : f32 to vector<8x128xf32>
      %442 = arith.select %440, %441, %438 : vector<8x128xi1>, vector<8x128xf32>
      %443 = arith.index_cast %arg3 : i32 to index
      %c0_173 = arith.constant 0 : index
      %c0_174 = arith.constant 0 : index
      %444 = vector.load %arg2[%443, %c0_173, %c0_174] : memref<2x8x128xf32, #tpu.memory_space<vmem>>, vector<1x8x128xf32>
      %445 = vector.shape_cast %444 : vector<1x8x128xf32> to vector<8x128xf32>
      %446 = vector.shape_cast %442 : vector<8x128xf32> to vector<1x8x128xf32>
      tpu.vector_store %arg2[%443, %c0_173, %c0_174], %446 {strides = array<i32>} : memref<2x8x128xf32, #tpu.memory_space<vmem>>, vector<1x8x128xf32>,
    }
    %c2_i32_22 = arith.constant 2 : i32
    return
  }
  func.func @transform_0(%arg0: i32) -> (i32, i32, i32) {
    %c0_i32 = arith.constant 0 : i32
    %c0_i32_0 = arith.constant 0 : i32
    %c0_i32_1 = arith.constant 0 : i32
    return %arg0, %c0_i32, %c0_i32_0 : i32, i32, i32
  }
  func.func @transform_1(%arg0: i32) -> (i32, i32, i32) {
    %c0_i32 = arith.constant 0 : i32
    %c0_i32_0 = arith.constant 0 : i32
    %c0_i32_1 = arith.constant 0 : i32
    return %arg0, %c0_i32, %c0_i32_0 : i32, i32, i32
  }
}

</mosaic_0001>

<llo_original>
// kernel: squeeze.7
$region0: #{squeeze.7}
  %s0 = inlined_call_operand.vmem [shape: f32[4,128], index: 0, kind: input, shape index: {}]
  %s1 = inlined_call_operand.vmem [shape: f32[64,8], index: 1, kind: output, shape index: {}]
  $region1: #{squeeze.7} parent=0
    #allocation0 [shape = 'u8[4096]{0}', space=vmem, size = 0x1000, scoped, tag = 'scoped mem for input reshape']
    %s3 = sshllo.u32 0, 4
    %v4 = vld [vmem:[%s0] sm:%s3]
    %5 = vst [vmem:[#allocation0] sm:%s3] %v4
    %v6 = vld [vmem:[#allocation0] sm:$0xf]
    %vm7 = vcmask 64512
    %8 = vst.msk [vmem:[%s1] ss:$16 sm:$0x3] %vm7, %v6
    %9 = vst.msk [vmem:[%s1] ss:$16 sm:$0xc] %vm7, %v6
    %v10 = vld [vmem:[#allocation0] sm:$0xf]
    %11 = vrot.lane.b32.xlu0 %v10, 120
    %v12 = vpop.permute.xlu0 %11
    %vm13 = vcmask 64512
    %s14 = scalar_lea.vmem %s1, 1
    %15 = vst.msk [vmem:[%s14] ss:$16 sm:$0x3] %vm13, %v12
    %s16 = scalar_lea.vmem %s1, 1
    %17 = vst.msk [vmem:[%s16] ss:$16 sm:$0xc] %vm13, %v12
    %v18 = vld [vmem:[#allocation0] sm:$0xf]
    %19 = vrot.lane.b32.xlu0 %v18, 112
    %v20 = vpop.permute.xlu0 %19
    %vm21 = vcmask 64512
    %s22 = scalar_lea.vmem %s1, 2
    %23 = vst.msk [vmem:[%s22] ss:$16 sm:$0x3] %vm21, %v20
    %s24 = scalar_lea.vmem %s1, 2
    %25 = vst.msk [vmem:[%s24] ss:$16 sm:$0xc] %vm21, %v20
    %v26 = vld [vmem:[#allocation0] sm:$0xf]
    %27 = vrot.lane.b32.xlu0 %v26, 104
    %v28 = vpop.permute.xlu0 %27
    %vm29 = vcmask 64512
    %s30 = scalar_lea.vmem %s1, 3
    %31 = vst.msk [vmem:[%s30] ss:$16 sm:$0x3] %vm29, %v28
    %s32 = scalar_lea.vmem %s1, 3
    %33 = vst.msk [vmem:[%s32] ss:$16 sm:$0xc] %vm29, %v28
    %v34 = vld [vmem:[#allocation0] sm:$0xf]
    %35 = vrot.lane.b32.xlu0 %v34, 96
    %v36 = vpop.permute.xlu0 %35
    %vm37 = vcmask 64512
    %s38 = scalar_lea.vmem %s1, 4
    %39 = vst.msk [vmem:[%s38] ss:$16 sm:$0x3] %vm37, %v36
    %s40 = scalar_lea.vmem %s1, 4
    %41 = vst.msk [vmem:[%s40] ss:$16 sm:$0xc] %vm37, %v36
    %v42 = vld [vmem:[#allocation0] sm:$0xf]
    %43 = vrot.lane.b32.xlu0 %v42, 88
    %v44 = vpop.permute.xlu0 %43
    %vm45 = vcmask 64512
    %s46 = scalar_lea.vmem %s1, 5
    %47 = vst.msk [vmem:[%s46] ss:$16 sm:$0x3] %vm45, %v44
    %s48 = scalar_lea.vmem %s1, 5
    %49 = vst.msk [vmem:[%s48] ss:$16 sm:$0xc] %vm45, %v44
    %v50 = vld [vmem:[#allocation0] sm:$0xf]
    %51 = vrot.lane.b32.xlu0 %v50, 80
    %v52 = vpop.permute.xlu0 %51
    %vm53 = vcmask 64512
    %s54 = scalar_lea.vmem %s1, 6
    %55 = vst.msk [vmem:[%s54] ss:$16 sm:$0x3] %vm53, %v52
    %s56 = scalar_lea.vmem %s1, 6
    %57 = vst.msk [vmem:[%s56] ss:$16 sm:$0xc] %vm53, %v52
    %v58 = vld [vmem:[#allocation0] sm:$0xf]
    %59 = vrot.lane.b32.xlu0 %v58, 72
    %v60 = vpop.permute.xlu0 %59
    %vm61 = vcmask 64512
    %s62 = scalar_lea.vmem %s1, 7
    %63 = vst.msk [vmem:[%s62] ss:$16 sm:$0x3] %vm61, %v60
    %s64 = scalar_lea.vmem %s1, 7
    %65 = vst.msk [vmem:[%s64] ss:$16 sm:$0xc] %vm61, %v60
    %v66 = vld [vmem:[#allocation0] sm:$0xf]
    %67 = vrot.lane.b32.xlu0 %v66, 64
    %v68 = vpop.permute.xlu0 %67
    %vm69 = vcmask 64512
    %s70 = scalar_lea.vmem %s1, 8
    %71 = vst.msk [vmem:[%s70] ss:$16 sm:$0x3] %vm69, %v68
    %s72 = scalar_lea.vmem %s1, 8
    %73 = vst.msk [vmem:[%s72] ss:$16 sm:$0xc] %vm69, %v68
    %v74 = vld [vmem:[#allocation0] sm:$0xf]
    %75 = vrot.lane.b32.xlu0 %v74, 56
    %v76 = vpop.permute.xlu0 %75
    %vm77 = vcmask 64512
    %s78 = scalar_lea.vmem %s1, 9
    %79 = vst.msk [vmem:[%s78] ss:$16 sm:$0x3] %vm77, %v76
    %s80 = scalar_lea.vmem %s1, 9
    %81 = vst.msk [vmem:[%s80] ss:$16 sm:$0xc] %vm77, %v76
    %v82 = vld [vmem:[#allocation0] sm:$0xf]
    %83 = vrot.lane.b32.xlu0 %v82, 48
    %v84 = vpop.permute.xlu0 %83
    %vm85 = vcmask 64512
    %s86 = scalar_lea.vmem %s1, 10
    %87 = vst.msk [vmem:[%s86] ss:$16 sm:$0x3] %vm85, %v84
    %s88 = scalar_lea.vmem %s1, 10
    %89 = vst.msk [vmem:[%s88] ss:$16 sm:$0xc] %vm85, %v84
    %v90 = vld [vmem:[#allocation0] sm:$0xf]
    %91 = vrot.lane.b32.xlu0 %v90, 40
    %v92 = vpop.permute.xlu0 %91
    %vm93 = vcmask 64512
    %s94 = scalar_lea.vmem %s1, 11
    %95 = vst.msk [vmem:[%s94] ss:$16 sm:$0x3] %vm93, %v92
    %s96 = scalar_lea.vmem %s1, 11
    %97 = vst.msk [vmem:[%s96] ss:$16 sm:$0xc] %vm93, %v92
    %v98 = vld [vmem:[#allocation0] sm:$0xf]
    %99 = vrot.lane.b32.xlu0 %v98, 32
    %v100 = vpop.permute.xlu0 %99
    %vm101 = vcmask 64512
    %s102 = scalar_lea.vmem %s1, 12
    %103 = vst.msk [vmem:[%s102] ss:$16 sm:$0x3] %vm101, %v100
    %s104 = scalar_lea.vmem %s1, 12
    %105 = vst.msk [vmem:[%s104] ss:$16 sm:$0xc] %vm101, %v100
    %v106 = vld [vmem:[#allocation0] sm:$0xf]
    %107 = vrot.lane.b32.xlu0 %v106, 24
    %v108 = vpop.permute.xlu0 %107
    %vm109 = vcmask 64512
    %s110 = scalar_lea.vmem %s1, 13
    %111 = vst.msk [vmem:[%s110] ss:$16 sm:$0x3] %vm109, %v108
    %s112 = scalar_lea.vmem %s1, 13
    %113 = vst.msk [vmem:[%s112] ss:$16 sm:$0xc] %vm109, %v108
    %v114 = vld [vmem:[#allocation0] sm:$0xf]
    %115 = vrot.lane.b32.xlu0 %v114, 16
    %v116 = vpop.permute.xlu0 %115
    %vm117 = vcmask 64512
    %s118 = scalar_lea.vmem %s1, 14
    %119 = vst.msk [vmem:[%s118] ss:$16 sm:$0x3] %vm117, %v116
    %s120 = scalar_lea.vmem %s1, 14
    %121 = vst.msk [vmem:[%s120] ss:$16 sm:$0xc] %vm117, %v116
    %v122 = vld [vmem:[#allocation0] sm:$0xf]
    %123 = vrot.lane.b32.xlu0 %v122, 8
    %v124 = vpop.permute.xlu0 %123
    %vm125 = vcmask 64512
    %s126 = scalar_lea.vmem %s1, 15
    %127 = vst.msk [vmem:[%s126] ss:$16 sm:$0x3] %vm125, %v124
    %s128 = scalar_lea.vmem %s1, 15
    %129 = vst.msk [vmem:[%s128] ss:$16 sm:$0xc] %vm125, %v124

// kernel: forward_batch.1
$region0: #{forward_batch.1}
  #allocation0 [shape = 'u32[]', space=smem, size = 0x4, offset = 0x4, fixed_abs, tag = 'smem constant byte address 0x4 - core index']
  #allocation1 [shape = 'u32[144,128]{1,0:T(1,128)}', space=vmem, size = 0x12000, scoped, tag = 'internal scratch']
  %s0 = inlined_call_operand.vmem [shape: f32[4,8,128], index: 0, kind: input, shape index: {}]
  %s1 = inlined_call_operand.vmem [shape: f32[4,8,128], index: 1, kind: output, shape index: {}]
  %s2 = sld [smem:[#allocation0]]
  $region44: #{forward_batch.1} parent=0
    _
  %s4 = ssub.s32 1, %s2
  %s5 = scalar_select 0, %s4, %s2
  loop: start=0, step=1, limit=4
  $region2: #{forward_batch.1} parent=0 // loop_pre_header
    _
  $region3: #{forward_batch.1} parent=0 // loop_header
    %s7 = sphi 0, %s11
    %p8 = scmp.ge.s32.totalorder %s7, 4
    %s17 = sphi 0, %s19
    %s20 = sphi 0, %s17
    %s21 = sphi 0, %s20
    %s37 = sphi 0, %s21
    %s43 = sphi 0, %s45
    %s46 = sphi 0, %s43
    %s47 = sphi 0, %s46
    %s63 = sphi 0, %s47
  $region4: #{forward_batch.1} parent=0 // loop_header_branch
    %10 = sbr.rel (%p8) target = $region8
  $region5: #{forward_batch.1} parent=0 // loop_body
    %s12 = ssub.s32 %s7, 1
    %s13 = ssub.s32 %s7, 2
    %s14 = sadd.s32 %s7, 1
    %s15 = ssub.s32 %s7, %s14
    %p16 = scmp.eq.s32.totalorder %s15, 0
    %s18 = sadd.s32 %s17, 1
    %s19 = scalar_select %p16, %s17, %s18
    %p22 = pneg %p16
    %p23 = scmp.eq.s32.totalorder %s7, 1
    %p24 = por %p22, %p23
    %p25 = scmp.ne.s32.totalorder %s17, %s20
    %p26 = scmp.eq.s32.totalorder %s7, 0
    %p27 = por %p25, %p26
    %p28 = scmp.ne.s32.totalorder %s17, %s20
    %p29 = scmp.eq.s32.totalorder %s12, 1
    %p30 = por %p28, %p29
    %p31 = scmp.ne.s32.totalorder %s20, %s21
    %p32 = scmp.eq.s32.totalorder %s12, 0
    %p33 = por %p31, %p32
    %p34 = scmp.ne.s32.totalorder %s20, %s21
    %p35 = scmp.eq.s32.totalorder %s13, 1
    %p36 = por %p34, %p35
    %p38 = scmp.ne.s32.totalorder %s21, %s37
    %p39 = scmp.eq.s32.totalorder %s13, 0
    %p40 = por %p38, %p39
    %s41 = ssub.s32 %s7, %s14
    %p42 = scmp.eq.s32.totalorder %s41, 0
    %s44 = sadd.s32 %s43, 1
    %s45 = scalar_select %p42, %s43, %s44
    %p48 = pneg %p42
    %p49 = scmp.eq.s32.totalorder %s7, 1
    %p50 = por %p48, %p49
    %p51 = scmp.ne.s32.totalorder %s43, %s46
    %p52 = scmp.eq.s32.totalorder %s7, 0
    %p53 = por %p51, %p52
    %p54 = scmp.ne.s32.totalorder %s43, %s46
    %p55 = scmp.eq.s32.totalorder %s12, 1
    %p56 = por %p54, %p55
    %p57 = scmp.ne.s32.totalorder %s46, %s47
    %p58 = scmp.eq.s32.totalorder %s12, 0
    %p59 = por %p57, %p58
    %p60 = scmp.ne.s32.totalorder %s46, %s47
    %p61 = scmp.eq.s32.totalorder %s13, 1
    %p62 = por %p60, %p61
    %p64 = scmp.ne.s32.totalorder %s47, %s63
    %p65 = scmp.eq.s32.totalorder %s13, 0
    %p66 = por %p64, %p65
    %p67 = scmp.le.s32.totalorder 1, %s7
    %p68 = scmp.lt.s32.totalorder %s7, 3
    %p69 = pnand %p67, %p68
    %p70 = pneg %p69
    // Predicated region
    $region9: #{forward_batch.1} parent=5 // pred_check
      _
    $region10: #{forward_batch.1} parent=5 // pred_check_branch
      %72 = sbr.rel (%p69) target = $region12
    $region11: #{forward_batch.1} parent=5 // pred_region
      %s73 = ssub.s32 %s7, 1
    $region12: #{forward_batch.1} parent=5 // pred_fallthru
      _
    %p74 = scmp.lt.s32.totalorder %s7, 2
    // Predicated region
    $region13: #{forward_batch.1} parent=5 // pred_check
      %p75 = pneg %p74
    $region14: #{forward_batch.1} parent=5 // pred_check_branch
      %77 = sbr.rel (%p75) target = $region16
    $region15: #{forward_batch.1} parent=5 // pred_region
      // Predicated region
      $region17: #{forward_batch.1} parent=15 // pred_check
        %p78 = pneg %p27
      $region18: #{forward_batch.1} parent=15 // pred_check_branch
        %80 = sbr.rel (%p78) target = $region20
      $region19: #{forward_batch.1} parent=15 // pred_region
        %s81 = smul.u32 2, %s7
        %p82 = scmp.lt.s32.totalorder %s81, 3
        %s83 = scalar_select %p82, %s81, 3
        %s84 = smul.addr %s83, 8
        %s85 = scalar_lea.vmem %s0, %s84
        %s86 = smul.u32 2, %s7
      $region20: #{forward_batch.1} parent=15 // pred_fallthru
        _
    $region16: #{forward_batch.1} parent=5 // pred_fallthru
      _
    %p87 = scmp.le.s32.totalorder 1, %s7
    %p88 = scmp.lt.s32.totalorder %s7, 3
    %p89 = pnand %p87, %p88
    %p90 = pneg %p89
    // Predicated region
    $region21: #{forward_batch.1} parent=5 // pred_check
      _
    $region22: #{forward_batch.1} parent=5 // pred_check_branch
      %92 = sbr.rel (%p89) target = $region24
    $region23: #{forward_batch.1} parent=5 // pred_region
      %s93 = ssub.s32 %s7, 1
      %s94 = smul.u32 2, %s12
      %p95 = scmp.lt.s32.totalorder %s94, 3
      %s96 = scalar_select %p95, %s94, 3
      %s97 = smul.addr %s96, 8
      %s98 = scalar_lea.vmem %s0, %s97
      %p99 = pneg %p33
      %p100 = pneg %p30
      %p101 = pneg %p59
      %p102 = pneg %p56
      %s103 = smul.u32 2, %s12
      %p104 = scmp.lt.s32.totalorder %s103, 3
      %s105 = scalar_select %p104, %s103, 3
      %s106 = smul.addr %s105, 8
      %s107 = scalar_lea.vmem %s1, %s106
      %s108 = smul.u32 2, %s12
      %p109 = scmp.lt.s32.totalorder %s108, 3
      %s110 = scalar_select %p109, %s108, 3
      %s111 = smul.addr %s110, 8
      %s112 = scalar_lea.vmem %s0, %s111
      %s113 = smul.u32 2, %s12
      %s114 = smul.u32 2, %s12
      %p115 = scmp.lt.s32.totalorder %s114, 3
      %s116 = scalar_select %p115, %s114, 3
      %s117 = smul.addr %s116, 8
      %s118 = scalar_lea.vmem %s1, %s117
      %s119 = smul.u32 2, %s12
      %v120 = vlaneseq
      %v121 = vshrl.u32 %v120, 7
      %v122 = vcvt.s32.f32 %v121
      %v123 = vlaneseq
      %v124 = vand.u32 %v123, 127
      %v125 = vcvt.s32.f32 %v124
      %v126 = vmul.f32 %v125, 0.125
      %v127 = vfloor.f32 %v126
      %v128 = vmul.f32 %v127, 8.0
      %v129 = vsub.f32 %v125, %v128
      %v130 = vsub.f32 %v122, 3.0
      %v131 = vand.u32 2147483647, %v130
      %v132 = vsub.f32 %v129, 3.0
      %v133 = vand.u32 2147483647, %v132
      %v134 = vadd.f32 %v131, %v133
      %vm135 = vcmp.lt.f32.partialorder %v122, 7.0
      %vm136 = vcmp.lt.f32.partialorder %v129, 7.0
      %vm137 = vmand %vm135, %vm136
      %vm138 = vcmp.eq.f32.partialorder %v131, 0.0
      %vm139 = vcmp.eq.f32.partialorder %v133, 0.0
      %vm140 = vmand %vm138, %vm139
      %vm141 = vcmp.eq.f32.partialorder %v131, 1.0
      %vm142 = vmand %vm139, %vm141
      %vm143 = vcmp.eq.f32.partialorder %v133, 1.0
      %vm144 = vmand %vm138, %vm143
      %v145 = vrot.slane %v131, 7
      %vm146 = vcmp.lt.f32.partialorder %v145, %v131
      %v147 = vrot.slane %v131, 1
      %vm148 = vcmp.lt.f32.partialorder %v147, %v131
      %149 = vrot.lane.b32.xlu0 %v133, 1
      %v150 = vpop.permute.xlu0 %149
      %vm151 = vcmp.lt.f32.partialorder %v150, %v133
      %152 = vrot.lane.b32.xlu0 %v133, 127
      %v153 = vpop.permute.xlu0 %152
      %vm154 = vcmp.lt.f32.partialorder %v153, %v133
      %155 = vrot.lane.b32.xlu0 %v125, 1
      %v156 = vpop.permute.xlu0 %155
      %v157 = vmul.f32 %v156, 0.125
      %v158 = vfloor.f32 %v157
      %vm159 = vcmp.eq.f32.partialorder %v158, %v127
      %160 = vrot.lane.b32.xlu0 %v125, 127
      %v161 = vpop.permute.xlu0 %160
      %v162 = vmul.f32 %v161, 0.125
      %v163 = vfloor.f32 %v162
      %vm164 = vcmp.eq.f32.partialorder %v163, %v127
      %165 = vrot.lane.b32.xlu0 %v125, 2
      %v166 = vpop.permute.xlu0 %165
      %v167 = vmul.f32 %v166, 0.125
      %v168 = vfloor.f32 %v167
      %vm169 = vcmp.eq.f32.partialorder %v168, %v127
      %170 = vrot.lane.b32.xlu0 %v125, 126
      %v171 = vpop.permute.xlu0 %170
      %v172 = vmul.f32 %v171, 0.125
      %v173 = vfloor.f32 %v172
      %vm174 = vcmp.eq.f32.partialorder %v173, %v127
      %175 = vrot.lane.b32.xlu0 %v125, 4
      %v176 = vpop.permute.xlu0 %175
      %v177 = vmul.f32 %v176, 0.125
      %v178 = vfloor.f32 %v177
      %vm179 = vcmp.eq.f32.partialorder %v178, %v127
      %180 = vrot.lane.b32.xlu0 %v125, 124
      %v181 = vpop.permute.xlu0 %180
      %v182 = vmul.f32 %v181, 0.125
      %v183 = vfloor.f32 %v182
      %vm184 = vcmp.eq.f32.partialorder %v183, %v127
      loop: start=0, step=1, limit=2
      $region25: #{forward_batch.1} parent=23 // loop_pre_header
        _
      $region26: #{forward_batch.1} parent=23 // loop_header
        %s186 = sphi 0, %s190
        %p187 = scmp.ge.s32.totalorder %s186, 2
      $region27: #{forward_batch.1} parent=23 // loop_header_branch
        %189 = sbr.rel (%p187) target = $region31
      $region28: #{forward_batch.1} parent=23 // loop_body
        %s191 = smul.u32 %s186, 8
        %s192 = scalar_lea.vmem %s112, %s191
        %v193 = vld [vmem:[%s192] sm:$0xff]
        %v194 = vmul.f32 %v193, 0.125
        %v195 = vfloor.f32 %v194
        %v196 = vmul.f32 %v193, 0.25
        %v197 = vfloor.f32 %v196
        %v198 = vmul.f32 %v197, 4.0
        %v199 = vsub.f32 %v193, %v198
        %vm200 = vcmp.ne.f32.partialorder %v199, 0.0
        %v201 = vmul.f32 %v195, 8.0
        %v202 = vsub.f32 %v193, %v201
        %vm203 = vcmp.ge.f32.partialorder %v202, 4.0
        %vm204 = vmxor %vm200, 1
        %vm205 = vmand %vm204, %vm137
        %v206 = vsel %vm205, 1.0, 0.0
        %v207 = vsel %vm146, %v206, 0.0
        %v208 = vsel %vm148, %v206, 0.0
        %v209 = vsel %vm151, %v206, 0.0
        %v210 = vsel %vm154, %v206, 0.0
        %v211 = vsel %vm142, %v206, 0.0
        %v212 = vsel %vm144, %v206, 0.0
        %v213 = vrot.slane %v211, 7
        %v214 = vmul.f32 %v213, %v207
        %v215 = vrot.slane %v211, 1
        %v216 = vmul.f32 %v215, %v208
        %v217 = vadd.f32 %v214, %v216
        %218 = vrot.lane.b32.xlu0 %v211, 1
        %v219 = vpop.permute.xlu0 %218
        %v220 = vmul.f32 %v219, %v209
        %221 = vrot.lane.b32.xlu0 %v211, 127
        %v222 = vpop.permute.xlu0 %221
        %v223 = vmul.f32 %v222, %v210
        %v224 = vadd.f32 %v220, %v223
        %v225 = vmax.f32 %v217, %v224
        %v226 = vmax.f32 %v211, %v225
        %v227 = vrot.slane %v212, 7
        %v228 = vmul.f32 %v227, %v207
        %v229 = vrot.slane %v212, 1
        %v230 = vmul.f32 %v229, %v208
        %v231 = vadd.f32 %v228, %v230
        %232 = vrot.lane.b32.xlu0 %v212, 1
        %v233 = vpop.permute.xlu0 %232
        %v234 = vmul.f32 %v233, %v209
        %235 = vrot.lane.b32.xlu0 %v212, 127
        %v236 = vpop.permute.xlu0 %235
        %v237 = vmul.f32 %v236, %v210
        %v238 = vadd.f32 %v234, %v237
        %v239 = vmax.f32 %v231, %v238
        %v240 = vmax.f32 %v212, %v239
        %v241 = vrot.slane %v226, 7
        %v242 = vmul.f32 %v241, %v207
        %v243 = vrot.slane %v226, 1
        %v244 = vmul.f32 %v243, %v208
        %v245 = vadd.f32 %v242, %v244
        %246 = vrot.lane.b32.xlu0 %v226, 1
        %v247 = vpop.permute.xlu0 %246
        %v248 = vmul.f32 %v247, %v209
        %249 = vrot.lane.b32.xlu0 %v226, 127
        %v250 = vpop.permute.xlu0 %249
        %v251 = vmul.f32 %v250, %v210
        %v252 = vadd.f32 %v248, %v251
        %v253 = vmax.f32 %v245, %v252
        %v254 = vmax.f32 %v226, %v253
        %v255 = vrot.slane %v240, 7
        %v256 = vmul.f32 %v255, %v207
        %v257 = vrot.slane %v240, 1
        %v258 = vmul.f32 %v257, %v208
        %v259 = vadd.f32 %v256, %v258
        %260 = vrot.lane.b32.xlu0 %v240, 1
        %v261 = vpop.permute.xlu0 %260
        %v262 = vmul.f32 %v261, %v209
        %263 = vrot.lane.b32.xlu0 %v240, 127
        %v264 = vpop.permute.xlu0 %263
        %v265 = vmul.f32 %v264, %v210
        %v266 = vadd.f32 %v262, %v265
        %v267 = vmax.f32 %v259, %v266
        %v268 = vmax.f32 %v240, %v267
        %v269 = vrot.slane %v254, 7
        %v270 = vmul.f32 %v269, %v207
        %v271 = vrot.slane %v254, 1
        %v272 = vmul.f32 %v271, %v208
        %v273 = vadd.f32 %v270, %v272
        %274 = vrot.lane.b32.xlu0 %v254, 1
        %v275 = vpop.permute.xlu0 %274
        %v276 = vmul.f32 %v275, %v209
        %277 = vrot.lane.b32.xlu0 %v254, 127
        %v278 = vpop.permute.xlu0 %277
        %v279 = vmul.f32 %v278, %v210
        %v280 = vadd.f32 %v276, %v279
        %v281 = vmax.f32 %v273, %v280
        %v282 = vmax.f32 %v254, %v281
        %v283 = vrot.slane %v268, 7
        %v284 = vmul.f32 %v283, %v207
        %v285 = vrot.slane %v268, 1
        %v286 = vmul.f32 %v285, %v208
        %v287 = vadd.f32 %v284, %v286
        %288 = vrot.lane.b32.xlu0 %v268, 1
        %v289 = vpop.permute.xlu0 %288
        %v290 = vmul.f32 %v289, %v209
        %291 = vrot.lane.b32.xlu0 %v268, 127
        %v292 = vpop.permute.xlu0 %291
        %v293 = vmul.f32 %v292, %v210
        %v294 = vadd.f32 %v290, %v293
        %v295 = vmax.f32 %v287, %v294
        %v296 = vmax.f32 %v268, %v295
        %v297 = vrot.slane %v282, 7
        %v298 = vmul.f32 %v297, %v207
        %v299 = vrot.slane %v282, 1
        %v300 = vmul.f32 %v299, %v208
        %v301 = vadd.f32 %v298, %v300
        %302 = vrot.lane.b32.xlu0 %v282, 1
        %v303 = vpop.permute.xlu0 %302
        %v304 = vmul.f32 %v303, %v209
        %305 = vrot.lane.b32.xlu0 %v282, 127
        %v306 = vpop.permute.xlu0 %305
        %v307 = vmul.f32 %v306, %v210
        %v308 = vadd.f32 %v304, %v307
        %v309 = vmax.f32 %v301, %v308
        %v310 = vmax.f32 %v282, %v309
        %v311 = vrot.slane %v296, 7
        %v312 = vmul.f32 %v311, %v207
        %v313 = vrot.slane %v296, 1
        %v314 = vmul.f32 %v313, %v208
        %v315 = vadd.f32 %v312, %v314
        %316 = vrot.lane.b32.xlu0 %v296, 1
        %v317 = vpop.permute.xlu0 %316
        %v318 = vmul.f32 %v317, %v209
        %319 = vrot.lane.b32.xlu0 %v296, 127
        %v320 = vpop.permute.xlu0 %319
        %v321 = vmul.f32 %v320, %v210
        %v322 = vadd.f32 %v318, %v321
        %v323 = vmax.f32 %v315, %v322
        %v324 = vmax.f32 %v296, %v323
        %v325 = vrot.slane %v310, 7
        %v326 = vmul.f32 %v325, %v207
        %v327 = vrot.slane %v310, 1
        %v328 = vmul.f32 %v327, %v208
        %v329 = vadd.f32 %v326, %v328
        %330 = vrot.lane.b32.xlu0 %v310, 1
        %v331 = vpop.permute.xlu0 %330
        %v332 = vmul.f32 %v331, %v209
        %333 = vrot.lane.b32.xlu0 %v310, 127
        %v334 = vpop.permute.xlu0 %333
        %v335 = vmul.f32 %v334, %v210
        %v336 = vadd.f32 %v332, %v335
        %v337 = vmax.f32 %v329, %v336
        %v338 = vmax.f32 %v310, %v337
        %v339 = vrot.slane %v324, 7
        %v340 = vmul.f32 %v339, %v207
        %v341 = vrot.slane %v324, 1
        %v342 = vmul.f32 %v341, %v208
        %v343 = vadd.f32 %v340, %v342
        %344 = vrot.lane.b32.xlu0 %v324, 1
        %v345 = vpop.permute.xlu0 %344
        %v346 = vmul.f32 %v345, %v209
        %347 = vrot.lane.b32.xlu0 %v324, 127
        %v348 = vpop.permute.xlu0 %347
        %v349 = vmul.f32 %v348, %v210
        %v350 = vadd.f32 %v346, %v349
        %v351 = vmax.f32 %v343, %v350
        %v352 = vmax.f32 %v324, %v351
        %v353 = vmax.f32 %v338, %v352
        %vm354 = vcmp.gt.f32.partialorder %v338, 0.0
        %v355 = vsel %vm354, 1.0, 0.0
        %vm356 = vcmp.gt.f32.partialorder %v134, 0.0
        %vm357 = vmand %vm203, %vm356
        %vm358 = vcmp.gt.f32.partialorder %v353, 0.0
        %vm359 = vmand %vm357, %vm358
        %v360 = vmul.f32 %v134, 2048.0
        %v361 = vmul.f32 %v122, 256.0
        %v362 = vadd.f32 %v360, %v361
        %v363 = vmul.f32 %v129, 2.0
        %v364 = vadd.f32 %v362, %v363
        %v365 = vadd.f32 %v364, %v355
        %v366 = vsel %vm359, %v365, 16384.0
        %v367 = vsel %vm140, %v195, 0.0
        %v368 = vsub.f32 3.0, %v367
        %v369 = vmul.f32 %v368, 262144.0
        %v370 = vadd.f32 %v369, %v366
        %v371 = vrot.slane %v370, 7
        %v372 = vmin.f32 %v370, %v371
        %v373 = vrot.slane %v372, 6
        %v374 = vmin.f32 %v372, %v373
        %v375 = vrot.slane %v374, 4
        %v376 = vmin.f32 %v374, %v375
        %377 = vrot.lane.b32.xlu0 %v376, 1
        %v378 = vpop.permute.xlu0 %377
        %v379 = vsel %vm159, %v378, 1048576.0
        %380 = vrot.lane.b32.xlu0 %v376, 127
        %v381 = vpop.permute.xlu0 %380
        %v382 = vsel %vm164, %v381, 1048576.0
        %v383 = vmin.f32 %v379, %v382
        %v384 = vmin.f32 %v376, %v383
        %385 = vrot.lane.b32.xlu0 %v384, 2
        %v386 = vpop.permute.xlu0 %385
        %v387 = vsel %vm169, %v386, 1048576.0
        %388 = vrot.lane.b32.xlu0 %v384, 126
        %v389 = vpop.permute.xlu0 %388
        %v390 = vsel %vm174, %v389, 1048576.0
        %v391 = vmin.f32 %v387, %v390
        %v392 = vmin.f32 %v384, %v391
        %393 = vrot.lane.b32.xlu0 %v392, 4
        %v394 = vpop.permute.xlu0 %393
        %v395 = vsel %vm179, %v394, 1048576.0
        %396 = vrot.lane.b32.xlu0 %v392, 124
        %v397 = vpop.permute.xlu0 %396
        %v398 = vsel %vm184, %v397, 1048576.0
        %v399 = vmin.f32 %v395, %v398
        %v400 = vmin.f32 %v392, %v399
        %v401 = vmul.f32 %v400, 3.8146973e-06
        %v402 = vfloor.f32 %v401
        %v403 = vsub.f32 3.0, %v402
        %v404 = vsub.f32 3.0, %v403
        %v405 = vmul.f32 %v404, 262144.0
        %v406 = vsub.f32 %v400, %v405
        %vm407 = vcmp.lt.f32.partialorder %v406, 16384.0
        %v408 = vmul.f32 %v406, 0.5
        %v409 = vfloor.f32 %v408
        %v410 = vmul.f32 %v409, 2.0
        %v411 = vsub.f32 %v406, %v410
        %vm412 = vcmp.gt.f32.partialorder %v411, 0.5
        %v413 = vmul.f32 %v409, 0.0078125
        %v414 = vfloor.f32 %v413
        %v415 = vmul.f32 %v414, 128.0
        %v416 = vsub.f32 %v409, %v415
        %v417 = vmul.f32 %v414, 0.125
        %v418 = vfloor.f32 %v417
        %v419 = vmul.f32 %v418, 8.0
        %v420 = vsub.f32 %v414, %v419
        %vm421 = vcmp.lt.f32.partialorder %v420, 3.0
        %v422 = vsel %vm421, 0.0, 2.0
        %vm423 = vcmp.lt.f32.partialorder %v416, 3.0
        %v424 = vsel %vm423, 1.0, 3.0
        %v425 = vsel %vm412, %v422, %v424
        %v426 = vsub.f32 %v418, 1.0
        %vm427 = vcmp.gt.f32.partialorder %v426, 0.0
        %v428 = vsel %vm427, -4.42882, -3.8098
        %vm429 = vcmp.gt.f32.partialorder %v426, 1.0
        %v430 = vmul.f32 %v428, 0.9
        %v431 = vadd.f32 %v430, -1.0
        %v432 = vsel %vm429, %v431, %v428
        %vm433 = vcmp.gt.f32.partialorder %v426, 2.0
        %v434 = vmul.f32 %v432, 0.9
        %v435 = vadd.f32 %v434, -1.0
        %v436 = vsel %vm433, %v435, %v432
        %vm437 = vcmp.gt.f32.partialorder %v426, 3.0
        %v438 = vmul.f32 %v436, 0.9
        %v439 = vadd.f32 %v438, -1.0
        %v440 = vsel %vm437, %v439, %v436
        %vm441 = vcmp.gt.f32.partialorder %v426, 4.0
        %v442 = vmul.f32 %v440, 0.9
        %v443 = vadd.f32 %v442, -1.0
        %v444 = vsel %vm441, %v443, %v440
        %v445 = vsel %vm427, 2.77118, 4.1902
        %v446 = vmul.f32 %v445, 0.9
        %v447 = vadd.f32 %v446, -1.0
        %v448 = vsel %vm429, %v447, %v445
        %v449 = vmul.f32 %v448, 0.9
        %v450 = vadd.f32 %v449, -1.0
        %v451 = vsel %vm433, %v450, %v448
        %v452 = vmul.f32 %v451, 0.9
        %v453 = vadd.f32 %v452, -1.0
        %v454 = vsel %vm437, %v453, %v451
        %v455 = vmul.f32 %v454, 0.9
        %v456 = vadd.f32 %v455, -1.0
        %v457 = vsel %vm441, %v456, %v454
        %vm458 = vcmp.eq.f32.partialorder %v129, %v425
        %v459 = vsel %vm458, %v457, %v444
        %v460 = vsel %vm407, %v459, -10.0
        %v461 = vmul.f32 %v403, 0.5
        %v462 = vfloor.f32 %v461
        %v463 = vmul.f32 %v462, 2.0
        %v464 = vsub.f32 %v403, %v463
        %vm465 = vcmp.gt.f32.partialorder %v464, 0.5
        %vm466 = vcmp.ge.f32.partialorder %v403, 2.0
        %v467 = vsel %vm465, -20.0, %v460
        %v468 = vsel %vm466, -10.0, %v467
        %vm469 = vcmp.eq.f32.partialorder %v129, 4.0
        %v470 = vsel %vm469, -10.0, %v468
        %s471 = scalar_lea.vmem %s118, %s191
        %472 = vst [vmem:[%s471] sm:$0xff] %v470
      $region29: #{forward_batch.1} parent=23 // loop_footer
        %s190 = sadd.s32 1, %s186
      $region30: #{forward_batch.1} parent=23 // loop_footer_branch
        %185 = sbr.rel target = $region26
      $region31: #{forward_batch.1} parent=23 // loop_exit
        _
      %s473 = smul.u32 2, %s12
      %p474 = scmp.lt.s32.totalorder %s473, 3
      %s475 = scalar_select %p474, %s473, 3
      %s476 = smul.addr %s475, 8
      %s477 = scalar_lea.vmem %s1, %s476
      // Predicated region
      $region32: #{forward_batch.1} parent=23 // pred_check
        %p478 = pneg %p56
      $region33: #{forward_batch.1} parent=23 // pred_check_branch
        %480 = sbr.rel (%p478) target = $region35
      $region34: #{forward_batch.1} parent=23 // pred_region
        %s481 = smul.u32 2, %s12
      $region35: #{forward_batch.1} parent=23 // pred_fallthru
        _
    $region24: #{forward_batch.1} parent=5 // pred_fallthru
      _
    %p482 = scmp.le.s32.totalorder 2, %s7
    // Predicated region
    $region36: #{forward_batch.1} parent=5 // pred_check
      %p483 = pneg %p482
    $region37: #{forward_batch.1} parent=5 // pred_check_branch
      %485 = sbr.rel (%p483) target = $region39
    $region38: #{forward_batch.1} parent=5 // pred_region
      %s486 = ssub.s32 %s7, 2
      // Predicated region
      $region40: #{forward_batch.1} parent=38 // pred_check
        %p487 = pneg %p62
      $region41: #{forward_batch.1} parent=38 // pred_check_branch
        %489 = sbr.rel (%p487) target = $region43
      $region42: #{forward_batch.1} parent=38 // pred_region
        %s490 = smul.u32 2, %s13
        %p491 = scmp.lt.s32.totalorder %s490, 3
        %s492 = scalar_select %p491, %s490, 3
        %s493 = smul.addr %s492, 8
        %s494 = scalar_lea.vmem %s1, %s493
      $region43: #{forward_batch.1} parent=38 // pred_fallthru
        _
    $region39: #{forward_batch.1} parent=5 // pred_fallthru
      _
  $region6: #{forward_batch.1} parent=0 // loop_footer
    %s11 = sadd.s32 1, %s7
  $region7: #{forward_batch.1} parent=0 // loop_footer_branch
    %6 = sbr.rel target = $region3
  $region8: #{forward_batch.1} parent=0 // loop_exit
    _

</llo_original>
